<compile_context>
chip_gen: v7x
topology: tpu7x:2x2x1
jax: 0.10.0
libtpu: 0.0.40
codegen_flags: <defaults>
</compile_context>

<pallas_src>
import math

import jax
import jax.numpy as jnp
from jax import lax
from jax.experimental import pallas as pl
from jax.experimental.pallas import tpu as pltpu


# ----------------------------------------------------------------------------- kernel
def _make_kernel(TB, GPAD, D, HD, half):
    TBH = TB * half          # output rows per grid step
    NR2 = 2 * TBH            # rows per gather group (first + second half nodes)
    R = 3 * NR2              # total gathered rows: (sel | pre | post)
    C = TB * GPAD            # flattened (batch-local) node rows of h
    NT = (((1,), (1,)), ((), ()))   # A @ B^T contraction (contract dim 1 with dim 1)

    def kernel(h_ref, gidx_ref, selt_ref, wqk_ref, m1a_ref, m1b_ref, w1s_ref,
               b1_ref, w2_ref, b2_ref, w3_ref, b3_ref, out_ref):
        f32 = jnp.float32

        # ---- block-diagonal gather one-hot built in-kernel (iota == idx, VPU) ----
        gidx = gidx_ref[...]                                    # (R, 1) int32 flat columns
        cols = lax.broadcasted_iota(jnp.int32, (R, C), 1)
        onehot = jnp.where(cols == gidx, 1.0, 0.0).astype(jnp.bfloat16)

        # ---- gather h rows for (identity | pre | post) with one MXU matmul ----
        hflat = h_ref[...]                                      # (C, D) bf16
        gath = jnp.dot(onehot, hflat,
                       preferred_element_type=f32).astype(jnp.bfloat16)   # (R, D), exact
        g_sel, g_pre, g_post = gath[:NR2], gath[NR2:2 * NR2], gath[2 * NR2:]

        # ---- fused multi-head projections: bf16 MXU, f32 accumulation ----
        wqk = wqk_ref[...]                                      # (D, 2*HD) = [W_Q | W_K]
        qk_sel = jnp.dot(g_sel, wqk, preferred_element_type=f32)          # (NR2, 2*HD)
        q_sel, k_sel = qk_sel[:, :HD], qk_sel[:, HD:]           # 128-lane aligned slices
        q_pre = jnp.dot(g_pre, wqk[:, :HD], preferred_element_type=f32)   # Q[pre[i]]
        k_post = jnp.dot(g_post, wqk[:, HD:], preferred_element_type=f32) # K[post[i]]

        # ---- compatibility:  Qp*K + Q*Kp - Qp*Kp == Q*Kp + Qp*(K - Kp)  (f32 VPU) ----
        e = q_sel * k_post + q_pre * (k_sel - k_post)           # (NR2, HD)
        e_first, e_second = e[:TBH], e[TBH:]                    # sublane-aligned halves

        # ---- agg MLP in transposed orientation: rows live on the lane axis so every
        #      layer and the final store are lane-dense (N = TBH).  fc1's per-head
        #      hidden-dim reduction + channel mixing is folded into M1a/M1b.
        z1 = (lax.dot_general(m1a_ref[...], e_first, NT, preferred_element_type=f32)
              + lax.dot_general(m1b_ref[...], e_second, NT, preferred_element_type=f32)
              + lax.dot_general(w1s_ref[...], selt_ref[...], NT, preferred_element_type=f32)
              + b1_ref[...])                                    # (F1, TBH)
        h1 = jnp.maximum(z1, 0.0)
        h2 = jnp.maximum(jnp.dot(w2_ref[...], h1, preferred_element_type=f32)
                         + b2_ref[...], 0.0)                    # (F2, TBH)
        outr = jnp.dot(w3_ref[...], h2, preferred_element_type=f32) + b3_ref[...]  # (1, TBH)

        out_ref[...] = outr.reshape(1, 1, TBH).astype(out_ref.dtype)

    return kernel


# ----------------------------------------------------------------------------- wrapper
def node_pair_removal_decoder(h_hat, solution, selection_recent, params, *, tb=8):
    """type_ == 'origin'. h_hat (B, GP1, D); solution (B, GP1) int; selection_recent (B, 4, half)."""
    B, GP1, D = h_hat.shape
    H, _, hd = params["W_Q"].shape
    assert hd == D, "type_='origin' implies hidden_dim == input_dim"
    half = GP1 // 2
    assert GP1 == 2 * half + 1, "expects odd graph_size_plus1 (depot node 0 + 2*half pair nodes)"
    NR = 2 * half
    HD = H * hd
    F1 = params["fc1_b"].shape[0]
    F2 = params["fc2_b"].shape[0]

    # ---- batch tiling: TB batches per grid step; keep >=2 steps for v7x's 2 TensorCores ----
    TB = max(1, min(int(tb), B))
    if B >= 2 and pl.cdiv(B, TB) < 2:
        TB = pl.cdiv(B, 2)
    num_steps = pl.cdiv(B, TB)
    B_pad = num_steps * TB
    TBH = TB * half
    assert TBH % 8 == 0, "TB*half must be a multiple of 8 (sublane tiling)"
    GPAD = ((GP1 + 7) // 8) * 8           # sublane-pad the node axis so flattening is free
    R = 6 * TBH                           # gathered rows/step: (sel|pre|post) x (first|second)
    C = TB * GPAD

    # ---- index pre-processing: flat int32 gather indices (no dense one-hots in HBM) ----
    pre = jnp.argsort(solution, axis=-1).astype(jnp.int32)
    post = solution.astype(jnp.int32)                          # type_ == 'origin'
    node_sel = jnp.arange(1, NR + 1, dtype=jnp.int32)          # nodes 1 .. 2*half
    sel_g = jnp.broadcast_to(node_sel[None, :], (B, NR))
    pre_g = pre[:, 1:NR + 1]
    post_g = post[:, 1:NR + 1]

    def pad_b(x):
        return jnp.pad(x, ((0, B_pad - B),) + ((0, 0),) * (x.ndim - 1))

    def layout_idx(idx):   # (B_pad, NR) node ids -> (num_steps, 2*TBH) flat column indices
        x = idx.reshape(num_steps, TB, 2, half)
        x = x + (jnp.arange(TB, dtype=jnp.int32) * GPAD)[None, :, None, None]
        x = jnp.transpose(x, (0, 2, 1, 3))                     # (step, part, b_local, j)
        return x.reshape(num_steps, 2 * TBH)

    gidx = jnp.concatenate([layout_idx(pad_b(sel_g)),
                            layout_idx(pad_b(pre_g)),
                            layout_idx(pad_b(post_g))], axis=1)          # (steps, R)
    gidx = gidx.reshape(num_steps * R, 1)

    # ---- activations: bf16 node embeddings (padded & flattened), f32 selection features ----
    h_pad = jnp.zeros((B_pad, GPAD, D), jnp.bfloat16).at[:B, :GP1, :].set(
        h_hat.astype(jnp.bfloat16))
    h_flat = h_pad.reshape(B_pad * GPAD, D)
    selt = jnp.transpose(selection_recent, (0, 2, 1)).astype(jnp.float32)  # (B, half, 4)
    selt_flat = pad_b(selt).reshape(B_pad * half, 4)

    # ---- weight repacking (constant-folds under jit; done once per parameter set) ----
    wq_cat = jnp.transpose(params["W_Q"], (1, 0, 2)).reshape(D, HD)
    wk_cat = jnp.transpose(params["W_K"], (1, 0, 2)).reshape(D, HD)
    wqk = jnp.concatenate([wq_cat, wk_cat], axis=1).astype(jnp.bfloat16)   # (D, 2*HD)
    fc1_w = params["fc1_w"].astype(jnp.float32)
    m1a = jnp.repeat(fc1_w[:, :H], hd, axis=1)                             # (F1, HD)
    m1b = jnp.repeat(fc1_w[:, H:2 * H], hd, axis=1)                        # (F1, HD)
    w1s = fc1_w[:, 2 * H:]                                                 # (F1, 4)
    b1c = params["fc1_b"].reshape(F1, 1).astype(jnp.float32)
    w2 = params["fc2_w"].astype(jnp.float32)                               # (F2, F1)
    b2c = params["fc2_b"].reshape(F2, 1).astype(jnp.float32)
    w3 = params["fc3_w"].astype(jnp.float32)                               # (1, F2)
    b3c = params["fc3_b"].reshape(1, 1).astype(jnp.float32)

    # ---- derived VMEM budget (generation-safe: <= default scoped limit on v5e/v6e/v7x) ----
    blk = 2 * (C * D * 2 + R * 4 + TBH * 4 * 4 + TBH * 4)                 # double-buffered I/O
    wts = 2 * (D * 2 * HD * 2 + 2 * F1 * HD * 4 + F1 * 4 * 4 + F1 * 4
               + F2 * F1 * 4 + F2 * 4 + F2 * 4 + 4)
    tmp = (R * C * 4 + R * D * 8 + 4 * 2 * TBH * HD * 4
           + 2 * TBH * HD * 4 + 3 * F1 * TBH * 4)
    vmem_limit = int(min(max(4 * (blk + wts + tmp), 8 * 1024 * 1024), 32 * 1024 * 1024))

    kernel = _make_kernel(TB, GPAD, D, HD, half)
    const = lambda s: (0, 0)

    out = pl.pallas_call(
        kernel,
        out_shape=jax.ShapeDtypeStruct((num_steps, 1, TBH), jnp.float32),
        grid_spec=pltpu.PrefetchScalarGridSpec(
            num_scalar_prefetch=0,
            grid=(num_steps,),
            in_specs=[
                pl.BlockSpec((C, D), lambda s: (s, 0)),        # node embeddings (bf16)
                pl.BlockSpec((R, 1), lambda s: (s, 0)),        # flat gather indices (int32)
                pl.BlockSpec((TBH, 4), lambda s: (s, 0)),      # selection_recent^T (f32)
                pl.BlockSpec((D, 2 * HD), const),              # [W_Q | W_K] packed (bf16)
                pl.BlockSpec((F1, HD), const),                 # fc1 first-half (expanded)
                pl.BlockSpec((F1, HD), const),                 # fc1 second-half (expanded)
                pl.BlockSpec((F1, 4), const),                  # fc1 selection part
                pl.BlockSpec((F1, 1), const),                  # fc1 bias (column)
                pl.BlockSpec((F2, F1), const),                 # fc2 weight
                pl.BlockSpec((F2, 1), const),                  # fc2 bias (column)
                pl.BlockSpec((1, F2), const),                  # fc3 weight (row)
                pl.BlockSpec((1, 1), const),                   # fc3 bias
            ],
            out_specs=pl.BlockSpec((1, 1, TBH), lambda s: (s, 0, 0)),
        ),
        compiler_params=pltpu.CompilerParams(
            dimension_semantics=("parallel",),
            vmem_limit_bytes=vmem_limit,
        ),
    )(h_flat, gidx, selt_flat, wqk, m1a, m1b, w1s, b1c, w2, b2c, w3, b3c)

    return out.reshape(B_pad, half)[:B]


# ----------------------------------------------------------------------------- pure-JAX reference
def node_pair_removal_decoder_ref(h_hat, solution, selection_recent, params):
    W_Q, W_K = params["W_Q"], params["W_K"]
    H, D, hd = W_Q.shape
    B, GP1, _ = h_hat.shape
    half = GP1 // 2

    pre = jnp.argsort(solution, axis=-1)
    post = solution

    hflat = h_hat.reshape(-1, D)
    shp = (H, B, GP1, hd)
    hidden_Q = jnp.einsum("md,hde->hme", hflat, W_Q).reshape(shp)
    hidden_K = jnp.einsum("md,hde->hme", hflat, W_K).reshape(shp)

    idx_pre = jnp.broadcast_to(pre[None, :, :, None], shp)
    idx_post = jnp.broadcast_to(post[None, :, :, None], shp)
    Q_pre = jnp.take_along_axis(hidden_Q, idx_pre, axis=2)
    K_post = jnp.take_along_axis(hidden_K, idx_post, axis=2)

    compat = ((Q_pre * hidden_K).sum(-1) + (hidden_Q * K_post).sum(-1)
              - (Q_pre * K_post).sum(-1))[:, :, 1:]                    # (H, B, 2*half)

    comp_pair = jnp.concatenate([compat[:, :, :half], compat[:, :, half:]], axis=0)  # (2H,B,half)
    feat = jnp.concatenate([jnp.transpose(comp_pair, (1, 2, 0)),
                            jnp.transpose(selection_recent, (0, 2, 1))], axis=-1)    # (B,half,2H+4)

    h1 = jax.nn.relu(feat @ params["fc1_w"].T + params["fc1_b"])
    h2 = jax.nn.relu(h1 @ params["fc2_w"].T + params["fc2_b"])
    out = (h2 @ params["fc3_w"].T + params["fc3_b"])[..., 0]           # (B, half)
    return out


# ----------------------------------------------------------------------------- params
def init_params(key, n_heads, input_dim):
    hd = input_dim                      # type_ == 'origin' => hidden_dim == input_dim
    agg_in = 2 * n_heads + 4
    ks = jax.random.split(key, 8)

    def u(k, shape):
        stdv = 1.0 / math.sqrt(shape[-1])
        return jax.random.uniform(k, shape, jnp.float32, -stdv, stdv)

    return {
        "W_Q": u(ks[0], (n_heads, input_dim, hd)),
        "W_K": u(ks[1], (n_heads, input_dim, hd)),
        "fc1_w": u(ks[2], (32, agg_in)),   # MLP(2H+4, 32, 32, 1)
        "fc1_b": u(ks[3], (32,)),
        "fc2_w": u(ks[4], (32, 32)),
        "fc2_b": u(ks[5], (32,)),
        "fc3_w": u(ks[6], (1, 32)),
        "fc3_b": u(ks[7], (1,)),
    }


# ----------------------------------------------------------------------------- main
if __name__ == "__main__":
    B, H, D, GRAPH = 2, 4, 32, 16          # batch, n_heads, input_dim, graph_size
    GP1 = GRAPH + 1                        # graph_size_plus1 (incl. depot node 0)
    HALF = GP1 // 2

    key = jax.random.PRNGKey(0)
    k_param, k_h, k_sel, k_sol = jax.random.split(key, 4)

    params = init_params(k_param, H, D)
    h_hat = jax.random.normal(k_h, (B, GP1, D), jnp.float32)
    selection_recent = jax.random.normal(k_sel, (B, 4, HALF), jnp.float32)
    sol_keys = jax.random.split(k_sol, B)
    solution = jnp.stack(
        [jax.random.permutation(sk, GP1) for sk in sol_keys]).astype(jnp.int32)

    # Round h and the projection weights to bf16-representable values so the kernel's
    # bf16 MXU path is value-exact; the residual tolerance only covers matmul-precision
    # differences in the (tiny) f32 agg-MLP.
    bf = lambda x: x.astype(jnp.bfloat16).astype(jnp.float32)
    h_hat = bf(h_hat)
    params["W_Q"] = bf(params["W_Q"])
    params["W_K"] = bf(params["W_K"])

    fwd = jax.jit(node_pair_removal_decoder)
    out = fwd(h_hat, solution, selection_recent, params)
    out = jax.block_until_ready(out)

    ref = node_pair_removal_decoder_ref(h_hat, solution, selection_recent, params)
    if not jnp.allclose(out, ref, rtol=2e-2, atol=2e-2):
        err = float(jnp.max(jnp.abs(out - ref)))
        raise AssertionError(f"Pallas kernel output mismatch vs reference (max abs err {err})")

    print("KERNEL_OK")
</pallas_src>

<mosaic_0001>
module attributes {stable_mosaic.version = 11 : i64} {
  func.func @kernel(%arg0: i32, %arg1: memref<24x32xbf16, #tpu.memory_space<vmem>>, %arg2: memref<48x1xi32, #tpu.memory_space<vmem>>, %arg3: memref<8x4xf32, #tpu.memory_space<vmem>>, %arg4: memref<32x256xbf16, #tpu.memory_space<vmem>>, %arg5: memref<32x128xf32, #tpu.memory_space<vmem>>, %arg6: memref<32x128xf32, #tpu.memory_space<vmem>>, %arg7: memref<32x4xf32, #tpu.memory_space<vmem>>, %arg8: memref<32x1xf32, #tpu.memory_space<vmem>>, %arg9: memref<32x32xf32, #tpu.memory_space<vmem>>, %arg10: memref<32x1xf32, #tpu.memory_space<vmem>>, %arg11: memref<1x32xf32, #tpu.memory_space<vmem>>, %arg12: memref<1x1xf32, #tpu.memory_space<vmem>>, %arg13: memref<1x1x8xf32, #tpu.memory_space<vmem>>) attributes {dimension_semantics = [#tpu.dimension_semantics<parallel>], iteration_bounds = array<i64: 2>, scalar_prefetch = 0 : i64, scratch_operands = 0 : i64, tpu.core_type = #tpu.core_type<tc>, window_params = [{transform_indices = @transform_0, window_bounds = array<i64: 24, 32>}, {transform_indices = @transform_1, window_bounds = array<i64: 48, 1>}, {transform_indices = @transform_2, window_bounds = array<i64: 8, 4>}, {pipeline_mode = #tpu.pipeline_mode<synchronous>, transform_indices = @transform_3, window_bounds = array<i64: 32, 256>}, {pipeline_mode = #tpu.pipeline_mode<synchronous>, transform_indices = @transform_4, window_bounds = array<i64: 32, 128>}, {pipeline_mode = #tpu.pipeline_mode<synchronous>, transform_indices = @transform_5, window_bounds = array<i64: 32, 128>}, {pipeline_mode = #tpu.pipeline_mode<synchronous>, transform_indices = @transform_6, window_bounds = array<i64: 32, 4>}, {pipeline_mode = #tpu.pipeline_mode<synchronous>, transform_indices = @transform_7, window_bounds = array<i64: 32, 1>}, {pipeline_mode = #tpu.pipeline_mode<synchronous>, transform_indices = @transform_8, window_bounds = array<i64: 32, 32>}, {pipeline_mode = #tpu.pipeline_mode<synchronous>, transform_indices = @transform_9, window_bounds = array<i64: 32, 1>}, {pipeline_mode = #tpu.pipeline_mode<synchronous>, transform_indices = @transform_10, window_bounds = array<i64: 1, 32>}, {pipeline_mode = #tpu.pipeline_mode<synchronous>, transform_indices = @transform_11, window_bounds = array<i64: 1, 1>}, {transform_indices = @transform_12, window_bounds = array<i64: 1, 1, 8>}]} {
    %c0 = arith.constant 0 : index
    %c0_0 = arith.constant 0 : index
    %0 = vector.load %arg2[%c0, %c0_0] : memref<48x1xi32, #tpu.memory_space<vmem>>, vector<48x1xi32>
    %1 = tpu.iota {dimensions = array<i32: 1>} : vector<48x24xi32>
    %2 = vector.broadcast %0 : vector<48x1xi32> to vector<48x24xi32>
    %3 = arith.cmpi eq, %1, %2 : vector<48x24xi32>
    %cst = arith.constant 1.000000e+00 : f32
    %cst_1 = arith.constant 0.000000e+00 : f32
    %4 = vector.broadcast %cst : f32 to vector<48x24xf32>
    %5 = vector.broadcast %cst_1 : f32 to vector<48x24xf32>
    %6 = arith.select %3, %4, %5 : vector<48x24xi1>, vector<48x24xf32>
    %7 = arith.truncf %6 : vector<48x24xf32> to vector<48x24xbf16>
    %c0_2 = arith.constant 0 : index
    %c0_3 = arith.constant 0 : index
    %8 = vector.load %arg1[%c0_2, %c0_3] : memref<24x32xbf16, #tpu.memory_space<vmem>>, vector<24x32xbf16>
    %cst_4 = arith.constant dense<0.000000e+00> : vector<48x32xf32>
    %9 = tpu.matmul %7, %8, %cst_4 {dimension_numbers = #tpu.dot_dimension_numbers<[1], [0], [0], [1], [0, 0, 1, 1], [], []>} : vector<48x24xbf16>, vector<24x32xbf16>, vector<48x32xf32> -> vector<48x32xf32>
    %10 = arith.truncf %9 : vector<48x32xf32> to vector<48x32xbf16>
    %11 = vector.extract_strided_slice %10 {offsets = [0, 0], sizes = [16, 32], strides = [1, 1]} : vector<48x32xbf16> to vector<16x32xbf16>
    %12 = vector.extract_strided_slice %10 {offsets = [16, 0], sizes = [16, 32], strides = [1, 1]} : vector<48x32xbf16> to vector<16x32xbf16>
    %13 = vector.extract_strided_slice %10 {offsets = [32, 0], sizes = [16, 32], strides = [1, 1]} : vector<48x32xbf16> to vector<16x32xbf16>
    %c0_5 = arith.constant 0 : index
    %c0_6 = arith.constant 0 : index
    %14 = vector.load %arg4[%c0_5, %c0_6] : memref<32x256xbf16, #tpu.memory_space<vmem>>, vector<32x256xbf16>
    %cst_7 = arith.constant dense<0.000000e+00> : vector<16x256xf32>
    %15 = tpu.matmul %11, %14, %cst_7 {dimension_numbers = #tpu.dot_dimension_numbers<[1], [0], [0], [1], [0, 0, 1, 1], [], []>} : vector<16x32xbf16>, vector<32x256xbf16>, vector<16x256xf32> -> vector<16x256xf32>
    %16 = vector.extract_strided_slice %15 {offsets = [0, 0], sizes = [16, 128], strides = [1, 1]} : vector<16x256xf32> to vector<16x128xf32>
    %17 = vector.extract_strided_slice %15 {offsets = [0, 128], sizes = [16, 128], strides = [1, 1]} : vector<16x256xf32> to vector<16x128xf32>
    %18 = vector.extract_strided_slice %14 {offsets = [0, 0], sizes = [32, 128], strides = [1, 1]} : vector<32x256xbf16> to vector<32x128xbf16>
    %cst_8 = arith.constant dense<0.000000e+00> : vector<16x128xf32>
    %19 = tpu.matmul %12, %18, %cst_8 {dimension_numbers = #tpu.dot_dimension_numbers<[1], [0], [0], [1], [0, 0, 1, 1], [], []>} : vector<16x32xbf16>, vector<32x128xbf16>, vector<16x128xf32> -> vector<16x128xf32>
    %20 = vector.extract_strided_slice %14 {offsets = [0, 128], sizes = [32, 128], strides = [1, 1]} : vector<32x256xbf16> to vector<32x128xbf16>
    %cst_9 = arith.constant dense<0.000000e+00> : vector<16x128xf32>
    %21 = tpu.matmul %13, %20, %cst_9 {dimension_numbers = #tpu.dot_dimension_numbers<[1], [0], [0], [1], [0, 0, 1, 1], [], []>} : vector<16x32xbf16>, vector<32x128xbf16>, vector<16x128xf32> -> vector<16x128xf32>
    %22 = arith.mulf %16, %21 : vector<16x128xf32>
    %23 = arith.subf %17, %21 : vector<16x128xf32>
    %24 = arith.mulf %19, %23 : vector<16x128xf32>
    %25 = arith.addf %22, %24 : vector<16x128xf32>
    %26 = vector.extract_strided_slice %25 {offsets = [0, 0], sizes = [8, 128], strides = [1, 1]} : vector<16x128xf32> to vector<8x128xf32>
    %27 = vector.extract_strided_slice %25 {offsets = [8, 0], sizes = [8, 128], strides = [1, 1]} : vector<16x128xf32> to vector<8x128xf32>
    %c0_10 = arith.constant 0 : index
    %c0_11 = arith.constant 0 : index
    %28 = vector.load %arg5[%c0_10, %c0_11] : memref<32x128xf32, #tpu.memory_space<vmem>>, vector<32x128xf32>
    %cst_12 = arith.constant dense<0.000000e+00> : vector<32x8xf32>
    %29 = tpu.matmul %28, %26, %cst_12 {dimension_numbers = #tpu.dot_dimension_numbers<[1], [1], [0], [0], [0, 0, 1, 0], [], []>} : vector<32x128xf32>, vector<8x128xf32>, vector<32x8xf32> -> vector<32x8xf32>
    %c0_13 = arith.constant 0 : index
    %c0_14 = arith.constant 0 : index
    %30 = vector.load %arg6[%c0_13, %c0_14] : memref<32x128xf32, #tpu.memory_space<vmem>>, vector<32x128xf32>
    %cst_15 = arith.constant dense<0.000000e+00> : vector<32x8xf32>
    %31 = tpu.matmul %30, %27, %cst_15 {dimension_numbers = #tpu.dot_dimension_numbers<[1], [1], [0], [0], [0, 0, 1, 0], [], []>} : vector<32x128xf32>, vector<8x128xf32>, vector<32x8xf32> -> vector<32x8xf32>
    %32 = arith.addf %29, %31 : vector<32x8xf32>
    %c0_16 = arith.constant 0 : index
    %c0_17 = arith.constant 0 : index
    %33 = vector.load %arg7[%c0_16, %c0_17] : memref<32x4xf32, #tpu.memory_space<vmem>>, vector<32x4xf32>
    %c0_18 = arith.constant 0 : index
    %c0_19 = arith.constant 0 : index
    %34 = vector.load %arg3[%c0_18, %c0_19] : memref<8x4xf32, #tpu.memory_space<vmem>>, vector<8x4xf32>
    %cst_20 = arith.constant dense<0.000000e+00> : vector<32x8xf32>
    %35 = tpu.matmul %33, %34, %cst_20 {dimension_numbers = #tpu.dot_dimension_numbers<[1], [1], [0], [0], [0, 0, 1, 0], [], []>} : vector<32x4xf32>, vector<8x4xf32>, vector<32x8xf32> -> vector<32x8xf32>
    %36 = arith.addf %32, %35 : vector<32x8xf32>
    %c0_21 = arith.constant 0 : index
    %c0_22 = arith.constant 0 : index
    %37 = vector.load %arg8[%c0_21, %c0_22] : memref<32x1xf32, #tpu.memory_space<vmem>>, vector<32x1xf32>
    %38 = vector.broadcast %37 : vector<32x1xf32> to vector<32x8xf32>
    %39 = arith.addf %36, %38 : vector<32x8xf32>
    %cst_23 = arith.constant 0.000000e+00 : f32
    %40 = vector.broadcast %cst_23 : f32 to vector<32x8xf32>
    %41 = arith.maximumf %39, %40 : vector<32x8xf32>
    %c0_24 = arith.constant 0 : index
    %c0_25 = arith.constant 0 : index
    %42 = vector.load %arg9[%c0_24, %c0_25] : memref<32x32xf32, #tpu.memory_space<vmem>>, vector<32x32xf32>
    %cst_26 = arith.constant dense<0.000000e+00> : vector<32x8xf32>
    %43 = tpu.matmul %42, %41, %cst_26 {dimension_numbers = #tpu.dot_dimension_numbers<[1], [0], [0], [1], [0, 0, 1, 1], [], []>} : vector<32x32xf32>, vector<32x8xf32>, vector<32x8xf32> -> vector<32x8xf32>
    %c0_27 = arith.constant 0 : index
    %c0_28 = arith.constant 0 : index
    %44 = vector.load %arg10[%c0_27, %c0_28] : memref<32x1xf32, #tpu.memory_space<vmem>>, vector<32x1xf32>
    %45 = vector.broadcast %44 : vector<32x1xf32> to vector<32x8xf32>
    %46 = arith.addf %43, %45 : vector<32x8xf32>
    %cst_29 = arith.constant 0.000000e+00 : f32
    %47 = vector.broadcast %cst_29 : f32 to vector<32x8xf32>
    %48 = arith.maximumf %46, %47 : vector<32x8xf32>
    %c0_30 = arith.constant 0 : index
    %c0_31 = arith.constant 0 : index
    %49 = vector.load %arg11[%c0_30, %c0_31] : memref<1x32xf32, #tpu.memory_space<vmem>>, vector<1x32xf32>
    %cst_32 = arith.constant dense<0.000000e+00> : vector<1x8xf32>
    %50 = tpu.matmul %49, %48, %cst_32 {dimension_numbers = #tpu.dot_dimension_numbers<[1], [0], [0], [1], [0, 0, 1, 1], [], []>} : vector<1x32xf32>, vector<32x8xf32>, vector<1x8xf32> -> vector<1x8xf32>
    %c0_33 = arith.constant 0 : index
    %c0_34 = arith.constant 0 : index
    %51 = vector.load %arg12[%c0_33, %c0_34] : memref<1x1xf32, #tpu.memory_space<vmem>>, vector<1x1xf32>
    %52 = vector.broadcast %51 : vector<1x1xf32> to vector<1x8xf32>
    %53 = arith.addf %50, %52 : vector<1x8xf32>
    %54 = vector.shape_cast %53 : vector<1x8xf32> to vector<1x1x8xf32>
    %c0_35 = arith.constant 0 : index
    %c0_36 = arith.constant 0 : index
    %c0_37 = arith.constant 0 : index
    %55 = vector.load %arg13[%c0_35, %c0_36, %c0_37] : memref<1x1x8xf32, #tpu.memory_space<vmem>>, vector<1x1x8xf32>
    tpu.vector_store %arg13[%c0_35, %c0_36, %c0_37], %54 {strides = array<i32>} : memref<1x1x8xf32, #tpu.memory_space<vmem>>, vector<1x1x8xf32>,
    return
  }
  func.func @transform_0(%arg0: i32) -> (i32, i32) {
    %c0_i32 = arith.constant 0 : i32
    %c0_i32_0 = arith.constant 0 : i32
    return %arg0, %c0_i32 : i32, i32
  }
  func.func @transform_1(%arg0: i32) -> (i32, i32) {
    %c0_i32 = arith.constant 0 : i32
    %c0_i32_0 = arith.constant 0 : i32
    return %arg0, %c0_i32 : i32, i32
  }
  func.func @transform_2(%arg0: i32) -> (i32, i32) {
    %c0_i32 = arith.constant 0 : i32
    %c0_i32_0 = arith.constant 0 : i32
    return %arg0, %c0_i32 : i32, i32
  }
  func.func @transform_3(%arg0: i32) -> (i32, i32) {
    %c0_i32 = arith.constant 0 : i32
    %c0_i32_0 = arith.constant 0 : i32
    %c0_i32_1 = arith.constant 0 : i32
    return %c0_i32, %c0_i32_0 : i32, i32
  }
  func.func @transform_4(%arg0: i32) -> (i32, i32) {
    %c0_i32 = arith.constant 0 : i32
    %c0_i32_0 = arith.constant 0 : i32
    %c0_i32_1 = arith.constant 0 : i32
    return %c0_i32, %c0_i32_0 : i32, i32
  }
  func.func @transform_5(%arg0: i32) -> (i32, i32) {
    %c0_i32 = arith.constant 0 : i32
    %c0_i32_0 = arith.constant 0 : i32
    %c0_i32_1 = arith.constant 0 : i32
    return %c0_i32, %c0_i32_0 : i32, i32
  }
  func.func @transform_6(%arg0: i32) -> (i32, i32) {
    %c0_i32 = arith.constant 0 : i32
    %c0_i32_0 = arith.constant 0 : i32
    %c0_i32_1 = arith.constant 0 : i32
    return %c0_i32, %c0_i32_0 : i32, i32
  }
  func.func @transform_7(%arg0: i32) -> (i32, i32) {
    %c0_i32 = arith.constant 0 : i32
    %c0_i32_0 = arith.constant 0 : i32
    %c0_i32_1 = arith.constant 0 : i32
    return %c0_i32, %c0_i32_0 : i32, i32
  }
  func.func @transform_8(%arg0: i32) -> (i32, i32) {
    %c0_i32 = arith.constant 0 : i32
    %c0_i32_0 = arith.constant 0 : i32
    %c0_i32_1 = arith.constant 0 : i32
    return %c0_i32, %c0_i32_0 : i32, i32
  }
  func.func @transform_9(%arg0: i32) -> (i32, i32) {
    %c0_i32 = arith.constant 0 : i32
    %c0_i32_0 = arith.constant 0 : i32
    %c0_i32_1 = arith.constant 0 : i32
    return %c0_i32, %c0_i32_0 : i32, i32
  }
  func.func @transform_10(%arg0: i32) -> (i32, i32) {
    %c0_i32 = arith.constant 0 : i32
    %c0_i32_0 = arith.constant 0 : i32
    %c0_i32_1 = arith.constant 0 : i32
    return %c0_i32, %c0_i32_0 : i32, i32
  }
  func.func @transform_11(%arg0: i32) -> (i32, i32) {
    %c0_i32 = arith.constant 0 : i32
    %c0_i32_0 = arith.constant 0 : i32
    %c0_i32_1 = arith.constant 0 : i32
    return %c0_i32, %c0_i32_0 : i32, i32
  }
  func.func @transform_12(%arg0: i32) -> (i32, i32, i32) {
    %c0_i32 = arith.constant 0 : i32
    %c0_i32_0 = arith.constant 0 : i32
    %c0_i32_1 = arith.constant 0 : i32
    return %arg0, %c0_i32, %c0_i32_0 : i32, i32, i32
  }
}

</mosaic_0001>

<llo_original>
// kernel: node_pair_removal_decoder.1
$region0: #{node_pair_removal_decoder.1}
  #allocation0 [shape = 'u32[]', space=smem, size = 0x4, offset = 0x4, fixed_abs, tag = 'smem constant byte address 0x4 - core index']
  #allocation1 [shape = 'u32[144,128]{1,0:T(1,128)}', space=vmem, size = 0x12000, scoped, tag = 'internal scratch']
  #allocation2 [shape = 'f32[1,1]{1,0:T(1,128)S(1)}', space=vmem, size = 0x200, scoped, tag = 'scoped memory for node_pair_removal_decoder.1']
  %s0 = inlined_call_operand.vmem [shape: bf16[48,32], index: 0, kind: input, shape index: {}]
  %s1 = inlined_call_operand.vmem [shape: s32[96,1], index: 1, kind: input, shape index: {}]
  %s2 = inlined_call_operand.vmem [shape: f32[16,4], index: 2, kind: input, shape index: {}]
  %s3 = inlined_call_operand.vmem [shape: bf16[32,256], index: 3, kind: input, shape index: {}]
  %s4 = inlined_call_operand.vmem [shape: f32[32,128], index: 4, kind: input, shape index: {}]
  %s5 = inlined_call_operand.vmem [shape: f32[32,128], index: 5, kind: input, shape index: {}]
  %s6 = inlined_call_operand.vmem [shape: f32[32,4], index: 6, kind: input, shape index: {}]
  %s7 = inlined_call_operand.vmem [shape: f32[32,1], index: 7, kind: input, shape index: {}]
  %s8 = inlined_call_operand.vmem [shape: f32[32,32], index: 8, kind: input, shape index: {}]
  %s9 = inlined_call_operand.vmem [shape: f32[32,1], index: 9, kind: input, shape index: {}]
  %s10 = inlined_call_operand.vmem [shape: f32[1,32], index: 10, kind: input, shape index: {}]
  %s11 = inlined_call_operand.<no memory space> [shape: f32[1,1], index: 11, kind: input, shape index: {}]
  %s12 = inlined_call_operand.hbm [shape: f32[2,1,8], index: 12, kind: output, shape index: {}]
  %s13 = sld [smem:[#allocation0]]
  $region81: #{node_pair_removal_decoder.1} parent=0
    _
  %s15 = ssub.s32 1, %s13
  %s16 = scalar_select 0, %s15, %s13
  %v17 = vstv %s11
  %18 = vst [vmem:[#allocation2] sm:$0x1] %v17
  $region1: #{node_pair_removal_decoder.1} parent=0
    #allocation3 [shape = 'u8[1024]{0}', space=vmem, size = 0x400, scoped, tag = 'output window, operand 0']
    #allocation4 [shape = 's32[2]{0}', space=sflag, size = 0x8, scoped, tag = 'scoped memory for node_pair_removal_decoder.1']
    %19 = vsyncpa [#allocation4], 0
    %s20 = scalar_lea.sflag [#allocation4], 1
    %21 = vsyncpa %s20, 0
    loop: start=0, step=1, limit=4
    $region2: #{node_pair_removal_decoder.1} parent=1 // loop_pre_header
      _
    $region3: #{node_pair_removal_decoder.1} parent=1 // loop_header
      %s23 = sphi 0, %s27
      %p24 = scmp.ge.s32.totalorder %s23, 4
      %s33 = sphi 0, %s35
      %s36 = sphi 0, %s33
      %s37 = sphi 0, %s36
      %s53 = sphi 0, %s37
      %s59 = sphi 0, %s61
      %s62 = sphi 0, %s59
      %s63 = sphi 0, %s62
      %s79 = sphi 0, %s63
      %s85 = sphi 0, %s87
      %s88 = sphi 0, %s85
      %s89 = sphi 0, %s88
      %s105 = sphi 0, %s89
      %s109 = sphi 0, %s109
      %s111 = sphi 0, %s109
      %s112 = sphi 0, %s111
      %s126 = sphi 0, %s112
      %s130 = sphi 0, %s130
      %s132 = sphi 0, %s130
      %s133 = sphi 0, %s132
      %s147 = sphi 0, %s133
      %s151 = sphi 0, %s151
      %s153 = sphi 0, %s151
      %s154 = sphi 0, %s153
      %s168 = sphi 0, %s154
      %s172 = sphi 0, %s172
      %s174 = sphi 0, %s172
      %s175 = sphi 0, %s174
      %s189 = sphi 0, %s175
      %s193 = sphi 0, %s193
      %s195 = sphi 0, %s193
      %s196 = sphi 0, %s195
      %s210 = sphi 0, %s196
      %s214 = sphi 0, %s214
      %s216 = sphi 0, %s214
      %s217 = sphi 0, %s216
      %s231 = sphi 0, %s217
      %s235 = sphi 0, %s235
      %s237 = sphi 0, %s235
      %s238 = sphi 0, %s237
      %s252 = sphi 0, %s238
      %s256 = sphi 0, %s256
      %s258 = sphi 0, %s256
      %s259 = sphi 0, %s258
      %s273 = sphi 0, %s259
      %s277 = sphi 0, %s277
      %s279 = sphi 0, %s277
      %s280 = sphi 0, %s279
      %s294 = sphi 0, %s280
      %s300 = sphi 0, %s302
      %s303 = sphi 0, %s300
      %s304 = sphi 0, %s303
      %s320 = sphi 0, %s304
    $region4: #{node_pair_removal_decoder.1} parent=1 // loop_header_branch
      %26 = sbr.rel (%p24) target = $region8
    $region5: #{node_pair_removal_decoder.1} parent=1 // loop_body
      %s28 = ssub.s32 %s23, 1
      %s29 = ssub.s32 %s23, 2
      %s30 = sadd.s32 %s23, 1
      %s31 = ssub.s32 %s23, %s30
      %p32 = scmp.eq.s32.totalorder %s31, 0
      %s34 = sadd.s32 %s33, 1
      %s35 = scalar_select %p32, %s33, %s34
      %p38 = pneg %p32
      %p39 = scmp.eq.s32.totalorder %s23, 1
      %p40 = por %p38, %p39
      %p41 = scmp.ne.s32.totalorder %s33, %s36
      %p42 = scmp.eq.s32.totalorder %s23, 0
      %p43 = por %p41, %p42
      %p44 = scmp.ne.s32.totalorder %s33, %s36
      %p45 = scmp.eq.s32.totalorder %s28, 1
      %p46 = por %p44, %p45
      %p47 = scmp.ne.s32.totalorder %s36, %s37
      %p48 = scmp.eq.s32.totalorder %s28, 0
      %p49 = por %p47, %p48
      %p50 = scmp.ne.s32.totalorder %s36, %s37
      %p51 = scmp.eq.s32.totalorder %s29, 1
      %p52 = por %p50, %p51
      %p54 = scmp.ne.s32.totalorder %s37, %s53
      %p55 = scmp.eq.s32.totalorder %s29, 0
      %p56 = por %p54, %p55
      %s57 = ssub.s32 %s23, %s30
      %p58 = scmp.eq.s32.totalorder %s57, 0
      %s60 = sadd.s32 %s59, 1
      %s61 = scalar_select %p58, %s59, %s60
      %p64 = pneg %p58
      %p65 = scmp.eq.s32.totalorder %s23, 1
      %p66 = por %p64, %p65
      %p67 = scmp.ne.s32.totalorder %s59, %s62
      %p68 = scmp.eq.s32.totalorder %s23, 0
      %p69 = por %p67, %p68
      %p70 = scmp.ne.s32.totalorder %s59, %s62
      %p71 = scmp.eq.s32.totalorder %s28, 1
      %p72 = por %p70, %p71
      %p73 = scmp.ne.s32.totalorder %s62, %s63
      %p74 = scmp.eq.s32.totalorder %s28, 0
      %p75 = por %p73, %p74
      %p76 = scmp.ne.s32.totalorder %s62, %s63
      %p77 = scmp.eq.s32.totalorder %s29, 1
      %p78 = por %p76, %p77
      %p80 = scmp.ne.s32.totalorder %s63, %s79
      %p81 = scmp.eq.s32.totalorder %s29, 0
      %p82 = por %p80, %p81
      %s83 = ssub.s32 %s23, %s30
      %p84 = scmp.eq.s32.totalorder %s83, 0
      %s86 = sadd.s32 %s85, 1
      %s87 = scalar_select %p84, %s85, %s86
      %p90 = pneg %p84
      %p91 = scmp.eq.s32.totalorder %s23, 1
      %p92 = por %p90, %p91
      %p93 = scmp.ne.s32.totalorder %s85, %s88
      %p94 = scmp.eq.s32.totalorder %s23, 0
      %p95 = por %p93, %p94
      %p96 = scmp.ne.s32.totalorder %s85, %s88
      %p97 = scmp.eq.s32.totalorder %s28, 1
      %p98 = por %p96, %p97
      %p99 = scmp.ne.s32.totalorder %s88, %s89
      %p100 = scmp.eq.s32.totalorder %s28, 0
      %p101 = por %p99, %p100
      %p102 = scmp.ne.s32.totalorder %s88, %s89
      %p103 = scmp.eq.s32.totalorder %s29, 1
      %p104 = por %p102, %p103
      %p106 = scmp.ne.s32.totalorder %s89, %s105
      %p107 = scmp.eq.s32.totalorder %s29, 0
      %p108 = por %p106, %p107
      %s110 = sadd.s32 %s109, 1
      %p113 = scmp.eq.s32.totalorder %s23, 1
      %p114 = scmp.ne.s32.totalorder %s109, %s111
      %p115 = scmp.eq.s32.totalorder %s23, 0
      %p116 = por %p114, %p115
      %p117 = scmp.ne.s32.totalorder %s109, %s111
      %p118 = scmp.eq.s32.totalorder %s28, 1
      %p119 = por %p117, %p118
      %p120 = scmp.ne.s32.totalorder %s111, %s112
      %p121 = scmp.eq.s32.totalorder %s28, 0
      %p122 = por %p120, %p121
      %p123 = scmp.ne.s32.totalorder %s111, %s112
      %p124 = scmp.eq.s32.totalorder %s29, 1
      %p125 = por %p123, %p124
      %p127 = scmp.ne.s32.totalorder %s112, %s126
      %p128 = scmp.eq.s32.totalorder %s29, 0
      %p129 = por %p127, %p128
      %s131 = sadd.s32 %s130, 1
      %p134 = scmp.eq.s32.totalorder %s23, 1
      %p135 = scmp.ne.s32.totalorder %s130, %s132
      %p136 = scmp.eq.s32.totalorder %s23, 0
      %p137 = por %p135, %p136
      %p138 = scmp.ne.s32.totalorder %s130, %s132
      %p139 = scmp.eq.s32.totalorder %s28, 1
      %p140 = por %p138, %p139
      %p141 = scmp.ne.s32.totalorder %s132, %s133
      %p142 = scmp.eq.s32.totalorder %s28, 0
      %p143 = por %p141, %p142
      %p144 = scmp.ne.s32.totalorder %s132, %s133
      %p145 = scmp.eq.s32.totalorder %s29, 1
      %p146 = por %p144, %p145
      %p148 = scmp.ne.s32.totalorder %s133, %s147
      %p149 = scmp.eq.s32.totalorder %s29, 0
      %p150 = por %p148, %p149
      %s152 = sadd.s32 %s151, 1
      %p155 = scmp.eq.s32.totalorder %s23, 1
      %p156 = scmp.ne.s32.totalorder %s151, %s153
      %p157 = scmp.eq.s32.totalorder %s23, 0
      %p158 = por %p156, %p157
      %p159 = scmp.ne.s32.totalorder %s151, %s153
      %p160 = scmp.eq.s32.totalorder %s28, 1
      %p161 = por %p159, %p160
      %p162 = scmp.ne.s32.totalorder %s153, %s154
      %p163 = scmp.eq.s32.totalorder %s28, 0
      %p164 = por %p162, %p163
      %p165 = scmp.ne.s32.totalorder %s153, %s154
      %p166 = scmp.eq.s32.totalorder %s29, 1
      %p167 = por %p165, %p166
      %p169 = scmp.ne.s32.totalorder %s154, %s168
      %p170 = scmp.eq.s32.totalorder %s29, 0
      %p171 = por %p169, %p170
      %s173 = sadd.s32 %s172, 1
      %p176 = scmp.eq.s32.totalorder %s23, 1
      %p177 = scmp.ne.s32.totalorder %s172, %s174
      %p178 = scmp.eq.s32.totalorder %s23, 0
      %p179 = por %p177, %p178
      %p180 = scmp.ne.s32.totalorder %s172, %s174
      %p181 = scmp.eq.s32.totalorder %s28, 1
      %p182 = por %p180, %p181
      %p183 = scmp.ne.s32.totalorder %s174, %s175
      %p184 = scmp.eq.s32.totalorder %s28, 0
      %p185 = por %p183, %p184
      %p186 = scmp.ne.s32.totalorder %s174, %s175
      %p187 = scmp.eq.s32.totalorder %s29, 1
      %p188 = por %p186, %p187
      %p190 = scmp.ne.s32.totalorder %s175, %s189
      %p191 = scmp.eq.s32.totalorder %s29, 0
      %p192 = por %p190, %p191
      %s194 = sadd.s32 %s193, 1
      %p197 = scmp.eq.s32.totalorder %s23, 1
      %p198 = scmp.ne.s32.totalorder %s193, %s195
      %p199 = scmp.eq.s32.totalorder %s23, 0
      %p200 = por %p198, %p199
      %p201 = scmp.ne.s32.totalorder %s193, %s195
      %p202 = scmp.eq.s32.totalorder %s28, 1
      %p203 = por %p201, %p202
      %p204 = scmp.ne.s32.totalorder %s195, %s196
      %p205 = scmp.eq.s32.totalorder %s28, 0
      %p206 = por %p204, %p205
      %p207 = scmp.ne.s32.totalorder %s195, %s196
      %p208 = scmp.eq.s32.totalorder %s29, 1
      %p209 = por %p207, %p208
      %p211 = scmp.ne.s32.totalorder %s196, %s210
      %p212 = scmp.eq.s32.totalorder %s29, 0
      %p213 = por %p211, %p212
      %s215 = sadd.s32 %s214, 1
      %p218 = scmp.eq.s32.totalorder %s23, 1
      %p219 = scmp.ne.s32.totalorder %s214, %s216
      %p220 = scmp.eq.s32.totalorder %s23, 0
      %p221 = por %p219, %p220
      %p222 = scmp.ne.s32.totalorder %s214, %s216
      %p223 = scmp.eq.s32.totalorder %s28, 1
      %p224 = por %p222, %p223
      %p225 = scmp.ne.s32.totalorder %s216, %s217
      %p226 = scmp.eq.s32.totalorder %s28, 0
      %p227 = por %p225, %p226
      %p228 = scmp.ne.s32.totalorder %s216, %s217
      %p229 = scmp.eq.s32.totalorder %s29, 1
      %p230 = por %p228, %p229
      %p232 = scmp.ne.s32.totalorder %s217, %s231
      %p233 = scmp.eq.s32.totalorder %s29, 0
      %p234 = por %p232, %p233
      %s236 = sadd.s32 %s235, 1
      %p239 = scmp.eq.s32.totalorder %s23, 1
      %p240 = scmp.ne.s32.totalorder %s235, %s237
      %p241 = scmp.eq.s32.totalorder %s23, 0
      %p242 = por %p240, %p241
      %p243 = scmp.ne.s32.totalorder %s235, %s237
      %p244 = scmp.eq.s32.totalorder %s28, 1
      %p245 = por %p243, %p244
      %p246 = scmp.ne.s32.totalorder %s237, %s238
      %p247 = scmp.eq.s32.totalorder %s28, 0
      %p248 = por %p246, %p247
      %p249 = scmp.ne.s32.totalorder %s237, %s238
      %p250 = scmp.eq.s32.totalorder %s29, 1
      %p251 = por %p249, %p250
      %p253 = scmp.ne.s32.totalorder %s238, %s252
      %p254 = scmp.eq.s32.totalorder %s29, 0
      %p255 = por %p253, %p254
      %s257 = sadd.s32 %s256, 1
      %p260 = scmp.eq.s32.totalorder %s23, 1
      %p261 = scmp.ne.s32.totalorder %s256, %s258
      %p262 = scmp.eq.s32.totalorder %s23, 0
      %p263 = por %p261, %p262
      %p264 = scmp.ne.s32.totalorder %s256, %s258
      %p265 = scmp.eq.s32.totalorder %s28, 1
      %p266 = por %p264, %p265
      %p267 = scmp.ne.s32.totalorder %s258, %s259
      %p268 = scmp.eq.s32.totalorder %s28, 0
      %p269 = por %p267, %p268
      %p270 = scmp.ne.s32.totalorder %s258, %s259
      %p271 = scmp.eq.s32.totalorder %s29, 1
      %p272 = por %p270, %p271
      %p274 = scmp.ne.s32.totalorder %s259, %s273
      %p275 = scmp.eq.s32.totalorder %s29, 0
      %p276 = por %p274, %p275
      %s278 = sadd.s32 %s277, 1
      %p281 = scmp.eq.s32.totalorder %s23, 1
      %p282 = scmp.ne.s32.totalorder %s277, %s279
      %p283 = scmp.eq.s32.totalorder %s23, 0
      %p284 = por %p282, %p283
      %p285 = scmp.ne.s32.totalorder %s277, %s279
      %p286 = scmp.eq.s32.totalorder %s28, 1
      %p287 = por %p285, %p286
      %p288 = scmp.ne.s32.totalorder %s279, %s280
      %p289 = scmp.eq.s32.totalorder %s28, 0
      %p290 = por %p288, %p289
      %p291 = scmp.ne.s32.totalorder %s279, %s280
      %p292 = scmp.eq.s32.totalorder %s29, 1
      %p293 = por %p291, %p292
      %p295 = scmp.ne.s32.totalorder %s280, %s294
      %p296 = scmp.eq.s32.totalorder %s29, 0
      %p297 = por %p295, %p296
      %s298 = ssub.s32 %s23, %s30
      %p299 = scmp.eq.s32.totalorder %s298, 0
      %s301 = sadd.s32 %s300, 1
      %s302 = scalar_select %p299, %s300, %s301
      %p305 = pneg %p299
      %p306 = scmp.eq.s32.totalorder %s23, 1
      %p307 = por %p305, %p306
      %p308 = scmp.ne.s32.totalorder %s300, %s303
      %p309 = scmp.eq.s32.totalorder %s23, 0
      %p310 = por %p308, %p309
      %p311 = scmp.ne.s32.totalorder %s300, %s303
      %p312 = scmp.eq.s32.totalorder %s28, 1
      %p313 = por %p311, %p312
      %p314 = scmp.ne.s32.totalorder %s303, %s304
      %p315 = scmp.eq.s32.totalorder %s28, 0
      %p316 = por %p314, %p315
      %p317 = scmp.ne.s32.totalorder %s303, %s304
      %p318 = scmp.eq.s32.totalorder %s29, 1
      %p319 = por %p317, %p318
      %p321 = scmp.ne.s32.totalorder %s304, %s320
      %p322 = scmp.eq.s32.totalorder %s29, 0
      %p323 = por %p321, %p322
      %p324 = scmp.le.s32.totalorder 1, %s23
      %p325 = scmp.lt.s32.totalorder %s23, 3
      %p326 = pnand %p324, %p325
      %p327 = pneg %p326
      // Predicated region
      $region9: #{node_pair_removal_decoder.1} parent=5 // pred_check
        _
      $region10: #{node_pair_removal_decoder.1} parent=5 // pred_check_branch
        %329 = sbr.rel (%p326) target = $region12
      $region11: #{node_pair_removal_decoder.1} parent=5 // pred_region
        %s330 = ssub.s32 %s23, 1
        // Predicated region
        $region13: #{node_pair_removal_decoder.1} parent=11 // pred_check
          %p331 = pneg %p122
        $region14: #{node_pair_removal_decoder.1} parent=11 // pred_check_branch
          %333 = sbr.rel (%p331) target = $region16
        $region15: #{node_pair_removal_decoder.1} parent=11 // pred_region
          _
        $region16: #{node_pair_removal_decoder.1} parent=11 // pred_fallthru
          _
        // Predicated region
        $region17: #{node_pair_removal_decoder.1} parent=11 // pred_check
          %p334 = pneg %p143
        $region18: #{node_pair_removal_decoder.1} parent=11 // pred_check_branch
          %336 = sbr.rel (%p334) target = $region20
        $region19: #{node_pair_removal_decoder.1} parent=11 // pred_region
          _
        $region20: #{node_pair_removal_decoder.1} parent=11 // pred_fallthru
          _
        // Predicated region
        $region21: #{node_pair_removal_decoder.1} parent=11 // pred_check
          %p337 = pneg %p164
        $region22: #{node_pair_removal_decoder.1} parent=11 // pred_check_branch
          %339 = sbr.rel (%p337) target = $region24
        $region23: #{node_pair_removal_decoder.1} parent=11 // pred_region
          _
        $region24: #{node_pair_removal_decoder.1} parent=11 // pred_fallthru
          _
        // Predicated region
        $region25: #{node_pair_removal_decoder.1} parent=11 // pred_check
          %p340 = pneg %p185
        $region26: #{node_pair_removal_decoder.1} parent=11 // pred_check_branch
          %342 = sbr.rel (%p340) target = $region28
        $region27: #{node_pair_removal_decoder.1} parent=11 // pred_region
          _
        $region28: #{node_pair_removal_decoder.1} parent=11 // pred_fallthru
          _
        // Predicated region
        $region29: #{node_pair_removal_decoder.1} parent=11 // pred_check
          %p343 = pneg %p206
        $region30: #{node_pair_removal_decoder.1} parent=11 // pred_check_branch
          %345 = sbr.rel (%p343) target = $region32
        $region31: #{node_pair_removal_decoder.1} parent=11 // pred_region
          _
        $region32: #{node_pair_removal_decoder.1} parent=11 // pred_fallthru
          _
        // Predicated region
        $region33: #{node_pair_removal_decoder.1} parent=11 // pred_check
          %p346 = pneg %p227
        $region34: #{node_pair_removal_decoder.1} parent=11 // pred_check_branch
          %348 = sbr.rel (%p346) target = $region36
        $region35: #{node_pair_removal_decoder.1} parent=11 // pred_region
          _
        $region36: #{node_pair_removal_decoder.1} parent=11 // pred_fallthru
          _
        // Predicated region
        $region37: #{node_pair_removal_decoder.1} parent=11 // pred_check
          %p349 = pneg %p248
        $region38: #{node_pair_removal_decoder.1} parent=11 // pred_check_branch
          %351 = sbr.rel (%p349) target = $region40
        $region39: #{node_pair_removal_decoder.1} parent=11 // pred_region
          _
        $region40: #{node_pair_removal_decoder.1} parent=11 // pred_fallthru
          _
        // Predicated region
        $region41: #{node_pair_removal_decoder.1} parent=11 // pred_check
          %p352 = pneg %p269
        $region42: #{node_pair_removal_decoder.1} parent=11 // pred_check_branch
          %354 = sbr.rel (%p352) target = $region44
        $region43: #{node_pair_removal_decoder.1} parent=11 // pred_region
          _
        $region44: #{node_pair_removal_decoder.1} parent=11 // pred_fallthru
          _
        // Predicated region
        $region45: #{node_pair_removal_decoder.1} parent=11 // pred_check
          %p355 = pneg %p290
        $region46: #{node_pair_removal_decoder.1} parent=11 // pred_check_branch
          %357 = sbr.rel (%p355) target = $region48
        $region47: #{node_pair_removal_decoder.1} parent=11 // pred_region
          _
        $region48: #{node_pair_removal_decoder.1} parent=11 // pred_fallthru
          _
      $region12: #{node_pair_removal_decoder.1} parent=5 // pred_fallthru
        _
      %p358 = scmp.lt.s32.totalorder %s23, 2
      // Predicated region
      $region49: #{node_pair_removal_decoder.1} parent=5 // pred_check
        %p359 = pneg %p358
      $region50: #{node_pair_removal_decoder.1} parent=5 // pred_check_branch
        %361 = sbr.rel (%p359) target = $region52
      $region51: #{node_pair_removal_decoder.1} parent=5 // pred_region
        // Predicated region
        $region53: #{node_pair_removal_decoder.1} parent=51 // pred_check
          %p362 = pneg %p43
        $region54: #{node_pair_removal_decoder.1} parent=51 // pred_check_branch
          %364 = sbr.rel (%p362) target = $region56
        $region55: #{node_pair_removal_decoder.1} parent=51 // pred_region
          %s365 = smul.u32 3, %s23
          %p366 = scmp.lt.s32.totalorder %s365, 5
          %s367 = scalar_select %p366, %s365, 5
          %s368 = smul.addr %s367, 4
          %s369 = scalar_lea.vmem %s0, %s368
          %s370 = smul.u32 3, %s23
        $region56: #{node_pair_removal_decoder.1} parent=51 // pred_fallthru
          _
        // Predicated region
        $region57: #{node_pair_removal_decoder.1} parent=51 // pred_check
          %p371 = pneg %p69
        $region58: #{node_pair_removal_decoder.1} parent=51 // pred_check_branch
          %373 = sbr.rel (%p371) target = $region60
        $region59: #{node_pair_removal_decoder.1} parent=51 // pred_region
          %s374 = smul.u32 6, %s23
          %p375 = scmp.lt.s32.totalorder %s374, 11
          %s376 = scalar_select %p375, %s374, 11
          %s377 = smul.addr %s376, 8
          %s378 = scalar_lea.vmem %s1, %s377
          %s379 = smul.u32 6, %s23
        $region60: #{node_pair_removal_decoder.1} parent=51 // pred_fallthru
          _
        // Predicated region
        $region61: #{node_pair_removal_decoder.1} parent=51 // pred_check
          %p380 = pneg %p95
        $region62: #{node_pair_removal_decoder.1} parent=51 // pred_check_branch
          %382 = sbr.rel (%p380) target = $region64
        $region63: #{node_pair_removal_decoder.1} parent=51 // pred_region
          %p383 = scmp.lt.s32.totalorder %s23, 1
          %s384 = scalar_select %p383, %s23, 1
          %s385 = smul.addr %s384, 8
          %s386 = scalar_lea.vmem %s2, %s385
        $region64: #{node_pair_removal_decoder.1} parent=51 // pred_fallthru
          _
      $region52: #{node_pair_removal_decoder.1} parent=5 // pred_fallthru
        _
      %p387 = scmp.le.s32.totalorder 1, %s23
      %p388 = scmp.lt.s32.totalorder %s23, 3
      %p389 = pnand %p387, %p388
      %p390 = pneg %p389
      // Predicated region
      $region65: #{node_pair_removal_decoder.1} parent=5 // pred_check
        _
      $region66: #{node_pair_removal_decoder.1} parent=5 // pred_check_branch
        %392 = sbr.rel (%p389) target = $region68
      $region67: #{node_pair_removal_decoder.1} parent=5 // pred_region
        %s393 = ssub.s32 %s23, 1
        %s394 = smul.u32 3, %s28
        %p395 = scmp.lt.s32.totalorder %s394, 5
        %s396 = scalar_select %p395, %s394, 5
        %s397 = smul.addr %s396, 4
        %s398 = scalar_lea.vmem %s0, %s397
        %p399 = pneg %p49
        %p400 = pneg %p46
        %s401 = smul.u32 6, %s28
        %p402 = scmp.lt.s32.totalorder %s401, 11
        %s403 = scalar_select %p402, %s401, 11
        %s404 = smul.addr %s403, 8
        %s405 = scalar_lea.vmem %s1, %s404
        %p406 = pneg %p75
        %p407 = pneg %p72
        %p408 = scmp.lt.s32.totalorder %s28, 1
        %s409 = scalar_select %p408, %s28, 1
        %s410 = smul.addr %s409, 8
        %s411 = scalar_lea.vmem %s2, %s410
        %p412 = pneg %p101
        %p413 = pneg %p98
        %p414 = pneg %p122
        %p415 = pneg %p119
        %p416 = pneg %p143
        %p417 = pneg %p140
        %p418 = pneg %p164
        %p419 = pneg %p161
        %p420 = pneg %p185
        %p421 = pneg %p182
        %p422 = pneg %p206
        %p423 = pneg %p203
        %p424 = pneg %p227
        %p425 = pneg %p224
        %p426 = pneg %p248
        %p427 = pneg %p245
        %p428 = pneg %p269
        %p429 = pneg %p266
        %p430 = pneg %p290
        %p431 = pneg %p287
        %p432 = pneg %p316
        %p433 = pneg %p313
        %s434 = sand.u32 %s303, 1
        %s435 = scalar_lea.sflag [#allocation4], %s434
        %s436 = sand.u32 %s303, 1
        %s437 = scalar_lea.vmem [#allocation3], %s436
        %s438 = smul.u32 3, %s28
        %p439 = scmp.lt.s32.totalorder %s438, 5
        %s440 = scalar_select %p439, %s438, 5
        %s441 = smul.addr %s440, 4
        %s442 = scalar_lea.vmem %s0, %s441
        %s443 = smul.u32 3, %s28
        %s444 = smul.u32 6, %s28
        %p445 = scmp.lt.s32.totalorder %s444, 11
        %s446 = scalar_select %p445, %s444, 11
        %s447 = smul.addr %s446, 8
        %s448 = scalar_lea.vmem %s1, %s447
        %s449 = smul.u32 6, %s28
        %p450 = scmp.lt.s32.totalorder %s28, 1
        %s451 = scalar_select %p450, %s28, 1
        %s452 = smul.addr %s451, 8
        %s453 = scalar_lea.vmem %s2, %s452
        %v455 = vld [vmem:[%s448] sm:$0xff]
        %v456 = vld [vmem:[%s448 + $0x8] sm:$0xff]
        %v457 = vld [vmem:[%s448 + $0x10] sm:$0xff]
        %v458 = vld [vmem:[%s448 + $0x18] sm:$0xff]
        %v459 = vld [vmem:[%s448 + $0x20] sm:$0xff]
        %v460 = vld [vmem:[%s448 + $0x28] sm:$0xff]
        %v461 = vlaneseq
        %v462 = vand.u32 %v461, 127
        %463 = vset.pattern.permute.xlu0 0
        %464 = vperm.xlu0 %463, %v455
        %v465 = vpop.permute.xlu0 %464
        %466 = vset.pattern.permute.xlu0 0
        %467 = vperm.xlu0 %466, %v456
        %v468 = vpop.permute.xlu0 %467
        %469 = vset.pattern.permute.xlu0 0
        %470 = vperm.xlu0 %469, %v457
        %v471 = vpop.permute.xlu0 %470
        %472 = vset.pattern.permute.xlu0 0
        %473 = vperm.xlu0 %472, %v458
        %v474 = vpop.permute.xlu0 %473
        %475 = vset.pattern.permute.xlu0 0
        %476 = vperm.xlu0 %475, %v459
        %v477 = vpop.permute.xlu0 %476
        %478 = vset.pattern.permute.xlu0 0
        %479 = vperm.xlu0 %478, %v460
        %v480 = vpop.permute.xlu0 %479
        %vm481 = vcmp.eq.s32.totalorder %v462, %v465
        %vm482 = vcmp.eq.s32.totalorder %v462, %v468
        %vm483 = vcmp.eq.s32.totalorder %v462, %v471
        %vm484 = vcmp.eq.s32.totalorder %v462, %v474
        %vm485 = vcmp.eq.s32.totalorder %v462, %v477
        %vm486 = vcmp.eq.s32.totalorder %v462, %v480
        %v487 = vsel %vm481, 1.0, 0.0
        %v488 = vsel %vm482, 1.0, 0.0
        %v489 = vsel %vm483, 1.0, 0.0
        %v490 = vsel %vm484, 1.0, 0.0
        %v491 = vsel %vm485, 1.0, 0.0
        %v492 = vsel %vm486, 1.0, 0.0
        %v493 = vpack.c.bf16 %v488, %v487
        %v494 = vpack.c.bf16 %v490, %v489
        %v495 = vpack.c.bf16 %v492, %v491
        %v496 = vld [vmem:[%s442] sm:$0xf]
        %v497 = vld [vmem:[%s442 + $0x4] sm:$0xf]
        %v498 = vld [vmem:[%s442 + $0x8] sm:$0xf]
        %v502 = vunpack.c.l.b16 %v496
        %v503 = vunpack.c.l.b16 %v497
        %v504 = vunpack.c.l.b16 %v498
        %v505 = vpack.c.b16 %v503, %v502
        %v506 = vpack.c.b16 %v504, %v504
        %vm508 = vcmask 195584
        %v510 = vsel %vm508, %v493, 0
        %v513 = vsel %vm508, %v494, 0
        %v516 = vsel %vm508, %v495, 0
        %vm518 = vcmask 1043456
        %v520 = vsel %vm518, %v506, 0
        %522 = vmatprep.subr.bf16.mxu0 0
        %523 = vmatpush1.bf16.msra.mxu0 %v505
        %524 = vmatprep.subr.bf16.mxu0 0
        %525 = vmatpush1.bf16.msra.mxu0 %v520
        %526 = vmatprep.subr.bf16.mxu0 0
        %527 = vmatpush1.bf16.msra.mxu0 0
        %528 = vmatprep.subr.bf16.mxu0 0
        %529 = vmatpush1.bf16.msra.mxu0 0
        %530 = vmatprep.subr.bf16.mxu0 0
        %531 = vmatpush1.bf16.msra.mxu0 0
        %532 = vmatprep.subr.bf16.mxu0 0
        %533 = vmatpush1.bf16.msra.mxu0 0
        %534 = vmatprep.subr.bf16.mxu0 0
        %535 = vmatpush1.bf16.msra.mxu0 0
        %536 = vmatprep.subr.bf16.mxu0 0
        %537 = vmatpush1.bf16.msra.mxu0 0
        %538 = vmatprep.subr.bf16.mxu0 0
        %539 = vmatpush1.bf16.msra.mxu0 0
        %540 = vmatprep.subr.bf16.mxu0 0
        %541 = vmatpush1.bf16.msra.mxu0 0
        %542 = vmatprep.subr.bf16.mxu0 0
        %543 = vmatpush1.bf16.msra.mxu0 0
        %544 = vmatprep.subr.bf16.mxu0 0
        %545 = vmatpush1.bf16.msra.mxu0 0
        %546 = vmatprep.subr.bf16.mxu0 0
        %547 = vmatpush1.bf16.msra.mxu0 0
        %548 = vmatprep.subr.bf16.mxu0 0
        %549 = vmatpush1.bf16.msra.mxu0 0
        %550 = vmatprep.subr.bf16.mxu0 0
        %551 = vmatpush1.bf16.msra.mxu0 0
        %552 = vmatprep.subr.bf16.mxu0 0
        %553 = vmatpush1.bf16.msra.mxu0 0
        %554 = vmatprep.mubr.bf16.mxu0 0
        %555 = vmatmul.mubr.bf16.gmra.mrb[0].mxu0 %v510
        %v556 = vpop.f32.mrb[0].mxu0
        %v557 = vadd.f32 0.0, %v556
        %v558 = vpop.f32.mrb[0].mxu0
        %v559 = vpop.f32.mrb[0].mxu0
        %v560 = vadd.f32 0.0, %v559
        %v561 = vpop.f32.mrb[0].mxu0
        %562 = vmatprep.mubr.bf16.mxu0 0
        %563 = vmatmul.mubr.bf16.gmra.mrb[0].mxu0 %v513
        %v564 = vpop.f32.mrb[0].mxu0
        %v565 = vadd.f32 0.0, %v564
        %v566 = vpop.f32.mrb[0].mxu0
        %v567 = vpop.f32.mrb[0].mxu0
        %v568 = vadd.f32 0.0, %v567
        %v569 = vpop.f32.mrb[0].mxu0
        %570 = vmatprep.mubr.bf16.mxu0 0
        %571 = vmatmul.mubr.bf16.gmra.mrb[0].mxu0 %v516
        %v572 = vpop.f32.mrb[0].mxu0
        %v573 = vadd.f32 0.0, %v572
        %v574 = vpop.f32.mrb[0].mxu0
        %v575 = vpop.f32.mrb[0].mxu0
        %v576 = vadd.f32 0.0, %v575
        %v577 = vpop.f32.mrb[0].mxu0
        %578 = vdwg.mxu0
        %v579 = vpack.c.bf16 %v560, %v557
        %v580 = vpack.c.bf16 %v568, %v565
        %v581 = vpack.c.bf16 %v576, %v573
        %v582 = vld [vmem:[%s3] sm:$0xff]
        %v583 = vld [vmem:[%s3 + $0x8] sm:$0xff]
        %v584 = vld [vmem:[%s3 + $0x10] sm:$0xff]
        %v585 = vld [vmem:[%s3 + $0x18] sm:$0xff]
        %v590 = vunpack.c.l.b16 %v582
        %v591 = vunpack.c.h.b16 %v582
        %v592 = vunpack.c.l.b16 %v583
        %v593 = vunpack.c.h.b16 %v583
        %v594 = vunpack.c.l.b16 %v584
        %v595 = vunpack.c.h.b16 %v584
        %v596 = vunpack.c.l.b16 %v585
        %v597 = vunpack.c.h.b16 %v585
        %v598 = vpack.c.b16 %v592, %v590
        %v599 = vpack.c.b16 %v593, %v591
        %v600 = vpack.c.b16 %v596, %v594
        %v601 = vpack.c.b16 %v597, %v595
        %vm606 = vcmask 261120
        %v608 = vsel %vm606, %v579, 0
        %610 = vmatprep.subr.bf16.mxu0 %v599
        %611 = vmatpush1.bf16.msra.mxu0 %v598
        %612 = vmatprep.subr.bf16.mxu0 %v601
        %613 = vmatpush1.bf16.msra.mxu0 %v600
        %614 = vmatprep.subr.bf16.mxu0 0
        %615 = vmatpush1.bf16.msra.mxu0 0
        %616 = vmatprep.subr.bf16.mxu0 0
        %617 = vmatpush1.bf16.msra.mxu0 0
        %618 = vmatprep.subr.bf16.mxu0 0
        %619 = vmatpush1.bf16.msra.mxu0 0
        %620 = vmatprep.subr.bf16.mxu0 0
        %621 = vmatpush1.bf16.msra.mxu0 0
        %622 = vmatprep.subr.bf16.mxu0 0
        %623 = vmatpush1.bf16.msra.mxu0 0
        %624 = vmatprep.subr.bf16.mxu0 0
        %625 = vmatpush1.bf16.msra.mxu0 0
        %626 = vmatprep.subr.bf16.mxu0 0
        %627 = vmatpush1.bf16.msra.mxu0 0
        %628 = vmatprep.subr.bf16.mxu0 0
        %629 = vmatpush1.bf16.msra.mxu0 0
        %630 = vmatprep.subr.bf16.mxu0 0
        %631 = vmatpush1.bf16.msra.mxu0 0
        %632 = vmatprep.subr.bf16.mxu0 0
        %633 = vmatpush1.bf16.msra.mxu0 0
        %634 = vmatprep.subr.bf16.mxu0 0
        %635 = vmatpush1.bf16.msra.mxu0 0
        %636 = vmatprep.subr.bf16.mxu0 0
        %637 = vmatpush1.bf16.msra.mxu0 0
        %638 = vmatprep.subr.bf16.mxu0 0
        %639 = vmatpush1.bf16.msra.mxu0 0
        %640 = vmatprep.subr.bf16.mxu0 0
        %641 = vmatpush1.bf16.msra.mxu0 0
        %642 = vmatprep.mubr.bf16.mxu0 0
        %643 = vmatmul.mubr.bf16.gmra.mrb[0].mxu0 %v608
        %v644 = vpop.f32.mrb[0].mxu0
        %v645 = vadd.f32 0.0, %v644
        %v646 = vpop.f32.mrb[0].mxu0
        %v647 = vadd.f32 0.0, %v646
        %v648 = vpop.f32.mrb[0].mxu0
        %v649 = vadd.f32 0.0, %v648
        %v650 = vpop.f32.mrb[0].mxu0
        %v651 = vadd.f32 0.0, %v650
        %652 = vdwg.mxu0
        %v654 = vsel %vm606, %v580, 0
        %656 = vmatprep.subr.bf16.mxu0 0
        %657 = vmatpush1.bf16.msra.mxu0 %v598
        %658 = vmatprep.subr.bf16.mxu0 0
        %659 = vmatpush1.bf16.msra.mxu0 %v600
        %660 = vmatprep.subr.bf16.mxu0 0
        %661 = vmatpush1.bf16.msra.mxu0 0
        %662 = vmatprep.subr.bf16.mxu0 0
        %663 = vmatpush1.bf16.msra.mxu0 0
        %664 = vmatprep.subr.bf16.mxu0 0
        %665 = vmatpush1.bf16.msra.mxu0 0
        %666 = vmatprep.subr.bf16.mxu0 0
        %667 = vmatpush1.bf16.msra.mxu0 0
        %668 = vmatprep.subr.bf16.mxu0 0
        %669 = vmatpush1.bf16.msra.mxu0 0
        %670 = vmatprep.subr.bf16.mxu0 0
        %671 = vmatpush1.bf16.msra.mxu0 0
        %672 = vmatprep.subr.bf16.mxu0 0
        %673 = vmatpush1.bf16.msra.mxu0 0
        %674 = vmatprep.subr.bf16.mxu0 0
        %675 = vmatpush1.bf16.msra.mxu0 0
        %676 = vmatprep.subr.bf16.mxu0 0
        %677 = vmatpush1.bf16.msra.mxu0 0
        %678 = vmatprep.subr.bf16.mxu0 0
        %679 = vmatpush1.bf16.msra.mxu0 0
        %680 = vmatprep.subr.bf16.mxu0 0
        %681 = vmatpush1.bf16.msra.mxu0 0
        %682 = vmatprep.subr.bf16.mxu0 0
        %683 = vmatpush1.bf16.msra.mxu0 0
        %684 = vmatprep.subr.bf16.mxu0 0
        %685 = vmatpush1.bf16.msra.mxu0 0
        %686 = vmatprep.subr.bf16.mxu0 0
        %687 = vmatpush1.bf16.msra.mxu0 0
        %688 = vmatprep.mubr.bf16.mxu0 0
        %689 = vmatmul.mubr.bf16.gmra.mrb[0].mxu0 %v654
        %v690 = vpop.f32.mrb[0].mxu0
        %v691 = vadd.f32 0.0, %v690
        %v692 = vpop.f32.mrb[0].mxu0
        %v693 = vpop.f32.mrb[0].mxu0
        %v694 = vadd.f32 0.0, %v693
        %v695 = vpop.f32.mrb[0].mxu0
        %696 = vdwg.mxu0
        %v698 = vsel %vm606, %v581, 0
        %700 = vmatprep.subr.bf16.mxu0 0
        %701 = vmatpush1.bf16.msra.mxu0 %v599
        %702 = vmatprep.subr.bf16.mxu0 0
        %703 = vmatpush1.bf16.msra.mxu0 %v601
        %704 = vmatprep.subr.bf16.mxu0 0
        %705 = vmatpush1.bf16.msra.mxu0 0
        %706 = vmatprep.subr.bf16.mxu0 0
        %707 = vmatpush1.bf16.msra.mxu0 0
        %708 = vmatprep.subr.bf16.mxu0 0
        %709 = vmatpush1.bf16.msra.mxu0 0
        %710 = vmatprep.subr.bf16.mxu0 0
        %711 = vmatpush1.bf16.msra.mxu0 0
        %712 = vmatprep.subr.bf16.mxu0 0
        %713 = vmatpush1.bf16.msra.mxu0 0
        %714 = vmatprep.subr.bf16.mxu0 0
        %715 = vmatpush1.bf16.msra.mxu0 0
        %716 = vmatprep.subr.bf16.mxu0 0
        %717 = vmatpush1.bf16.msra.mxu0 0
        %718 = vmatprep.subr.bf16.mxu0 0
        %719 = vmatpush1.bf16.msra.mxu0 0
        %720 = vmatprep.subr.bf16.mxu0 0
        %721 = vmatpush1.bf16.msra.mxu0 0
        %722 = vmatprep.subr.bf16.mxu0 0
        %723 = vmatpush1.bf16.msra.mxu0 0
        %724 = vmatprep.subr.bf16.mxu0 0
        %725 = vmatpush1.bf16.msra.mxu0 0
        %726 = vmatprep.subr.bf16.mxu0 0
        %727 = vmatpush1.bf16.msra.mxu0 0
        %728 = vmatprep.subr.bf16.mxu0 0
        %729 = vmatpush1.bf16.msra.mxu0 0
        %730 = vmatprep.subr.bf16.mxu0 0
        %731 = vmatpush1.bf16.msra.mxu0 0
        %732 = vmatprep.mubr.bf16.mxu0 0
        %733 = vmatmul.mubr.bf16.gmra.mrb[0].mxu0 %v698
        %v734 = vpop.f32.mrb[0].mxu0
        %v735 = vadd.f32 0.0, %v734
        %v736 = vpop.f32.mrb[0].mxu0
        %v737 = vpop.f32.mrb[0].mxu0
        %v738 = vadd.f32 0.0, %v737
        %v739 = vpop.f32.mrb[0].mxu0
        %740 = vdwg.mxu0
        %v741 = vmul.f32 %v645, %v735
        %v742 = vmul.f32 %v649, %v738
        %v743 = vsub.f32 %v647, %v735
        %v744 = vsub.f32 %v651, %v738
        %v745 = vmul.f32 %v691, %v743
        %v746 = vmul.f32 %v694, %v744
        %v747 = vadd.f32 %v741, %v745
        %v748 = vadd.f32 %v742, %v746
        %v749 = vld [vmem:[%s4] sm:$0xff]
        %v750 = vld [vmem:[%s4 + $0x8] sm:$0xff]
        %v751 = vld [vmem:[%s4 + $0x10] sm:$0xff]
        %v752 = vld [vmem:[%s4 + $0x18] sm:$0xff]
        %v753 = vld [vmem:[%s5] sm:$0xff]
        %v754 = vld [vmem:[%s5 + $0x8] sm:$0xff]
        %v755 = vld [vmem:[%s5 + $0x10] sm:$0xff]
        %v756 = vld [vmem:[%s5 + $0x18] sm:$0xff]
        %757 = vmatprep.subr.mxu0 0.0
        %758 = vmatpush1.xpose.msra.mxu0 %v748
        %759 = vmatprep.subr.mxu0 0.0
        %760 = vmatpush1.xpose.msra.mxu0 0.0
        %761 = vmatprep.subr.mxu0 0.0
        %762 = vmatpush1.xpose.msra.mxu0 0.0
        %763 = vmatprep.subr.mxu0 0.0
        %764 = vmatpush1.xpose.msra.mxu0 0.0
        %765 = vmatprep.subr.mxu0 0.0
        %766 = vmatpush1.xpose.msra.mxu0 0.0
        %767 = vmatprep.subr.mxu0 0.0
        %768 = vmatpush1.xpose.msra.mxu0 0.0
        %769 = vmatprep.subr.mxu0 0.0
        %770 = vmatpush1.xpose.msra.mxu0 0.0
        %771 = vmatprep.subr.mxu0 0.0
        %772 = vmatpush1.xpose.msra.mxu0 0.0
        %773 = vmatprep.subr.mxu0 0.0
        %774 = vmatpush1.xpose.msra.mxu0 0.0
        %775 = vmatprep.subr.mxu0 0.0
        %776 = vmatpush1.xpose.msra.mxu0 0.0
        %777 = vmatprep.subr.mxu0 0.0
        %778 = vmatpush1.xpose.msra.mxu0 0.0
        %779 = vmatprep.subr.mxu0 0.0
        %780 = vmatpush1.xpose.msra.mxu0 0.0
        %781 = vmatprep.subr.mxu0 0.0
        %782 = vmatpush1.xpose.msra.mxu0 0.0
        %783 = vmatprep.subr.mxu0 0.0
        %784 = vmatpush1.xpose.msra.mxu0 0.0
        %785 = vmatprep.subr.mxu0 0.0
        %786 = vmatpush1.xpose.msra.mxu0 0.0
        %787 = vmatprep.subr.mxu0 0.0
        %788 = vmatpush1.xpose.msra.mxu0 0.0
        %789 = vmatprep.subr.mxu0 0.0
        %790 = vmatpush1.xpose.msra.mxu0 0.0
        %791 = vmatprep.subr.mxu0 0.0
        %792 = vmatpush1.xpose.msra.mxu0 0.0
        %793 = vmatprep.subr.mxu0 0.0
        %794 = vmatpush1.xpose.msra.mxu0 0.0
        %795 = vmatprep.subr.mxu0 0.0
        %796 = vmatpush1.xpose.msra.mxu0 0.0
        %797 = vmatprep.subr.mxu0 0.0
        %798 = vmatpush1.xpose.msra.mxu0 0.0
        %799 = vmatprep.subr.mxu0 0.0
        %800 = vmatpush1.xpose.msra.mxu0 0.0
        %801 = vmatprep.subr.mxu0 0.0
        %802 = vmatpush1.xpose.msra.mxu0 0.0
        %803 = vmatprep.subr.mxu0 0.0
        %804 = vmatpush1.xpose.msra.mxu0 0.0
        %805 = vmatprep.subr.mxu0 0.0
        %806 = vmatpush1.xpose.msra.mxu0 0.0
        %807 = vmatprep.subr.mxu0 0.0
        %808 = vmatpush1.xpose.msra.mxu0 0.0
        %809 = vmatprep.subr.mxu0 0.0
        %810 = vmatpush1.xpose.msra.mxu0 0.0
        %811 = vmatprep.subr.mxu0 0.0
        %812 = vmatpush1.xpose.msra.mxu0 0.0
        %813 = vmatprep.subr.mxu0 0.0
        %814 = vmatpush1.xpose.msra.mxu0 0.0
        %815 = vmatprep.subr.mxu0 0.0
        %816 = vmatpush1.xpose.msra.mxu0 0.0
        %817 = vmatprep.subr.mxu0 0.0
        %818 = vmatpush1.xpose.msra.mxu0 0.0
        %819 = vmatprep.subr.mxu0 0.0
        %820 = vmatpush1.xpose.msra.mxu0 0.0
        %821 = vmatprep.mubr.f32.mxu0 0.0
        %822 = vmatmul.mubr.f32.gmra.mrb[0].mxu0 %v753
        %v823 = vpop.f32.mrb[0].mxu0
        %v824 = vadd.f32 0.0, %v823
        %v825 = vpop.f32.mrb[0].mxu0
        %826 = vmatprep.mubr.f32.mxu0 0.0
        %827 = vmatmul.mubr.f32.gmra.mrb[0].mxu0 %v754
        %v828 = vpop.f32.mrb[0].mxu0
        %v829 = vadd.f32 0.0, %v828
        %v830 = vpop.f32.mrb[0].mxu0
        %831 = vmatprep.mubr.f32.mxu0 0.0
        %832 = vmatmul.mubr.f32.gmra.mrb[0].mxu0 %v755
        %v833 = vpop.f32.mrb[0].mxu0
        %v834 = vadd.f32 0.0, %v833
        %v835 = vpop.f32.mrb[0].mxu0
        %836 = vmatprep.mubr.f32.mxu0 0.0
        %837 = vmatmul.mubr.f32.gmra.mrb[0].mxu0 %v756
        %v838 = vpop.f32.mrb[0].mxu0
        %v839 = vadd.f32 0.0, %v838
        %v840 = vpop.f32.mrb[0].mxu0
        %841 = vdwg.mxu0
        %842 = vmatprep.subr.mxu0 0.0
        %843 = vmatpush1.xpose.msra.mxu0 %v747
        %844 = vmatprep.subr.mxu0 0.0
        %845 = vmatpush1.xpose.msra.mxu0 0.0
        %846 = vmatprep.subr.mxu0 0.0
        %847 = vmatpush1.xpose.msra.mxu0 0.0
        %848 = vmatprep.subr.mxu0 0.0
        %849 = vmatpush1.xpose.msra.mxu0 0.0
        %850 = vmatprep.subr.mxu0 0.0
        %851 = vmatpush1.xpose.msra.mxu0 0.0
        %852 = vmatprep.subr.mxu0 0.0
        %853 = vmatpush1.xpose.msra.mxu0 0.0
        %854 = vmatprep.subr.mxu0 0.0
        %855 = vmatpush1.xpose.msra.mxu0 0.0
        %856 = vmatprep.subr.mxu0 0.0
        %857 = vmatpush1.xpose.msra.mxu0 0.0
        %858 = vmatprep.subr.mxu0 0.0
        %859 = vmatpush1.xpose.msra.mxu0 0.0
        %860 = vmatprep.subr.mxu0 0.0
        %861 = vmatpush1.xpose.msra.mxu0 0.0
        %862 = vmatprep.subr.mxu0 0.0
        %863 = vmatpush1.xpose.msra.mxu0 0.0
        %864 = vmatprep.subr.mxu0 0.0
        %865 = vmatpush1.xpose.msra.mxu0 0.0
        %866 = vmatprep.subr.mxu0 0.0
        %867 = vmatpush1.xpose.msra.mxu0 0.0
        %868 = vmatprep.subr.mxu0 0.0
        %869 = vmatpush1.xpose.msra.mxu0 0.0
        %870 = vmatprep.subr.mxu0 0.0
        %871 = vmatpush1.xpose.msra.mxu0 0.0
        %872 = vmatprep.subr.mxu0 0.0
        %873 = vmatpush1.xpose.msra.mxu0 0.0
        %874 = vmatprep.subr.mxu0 0.0
        %875 = vmatpush1.xpose.msra.mxu0 0.0
        %876 = vmatprep.subr.mxu0 0.0
        %877 = vmatpush1.xpose.msra.mxu0 0.0
        %878 = vmatprep.subr.mxu0 0.0
        %879 = vmatpush1.xpose.msra.mxu0 0.0
        %880 = vmatprep.subr.mxu0 0.0
        %881 = vmatpush1.xpose.msra.mxu0 0.0
        %882 = vmatprep.subr.mxu0 0.0
        %883 = vmatpush1.xpose.msra.mxu0 0.0
        %884 = vmatprep.subr.mxu0 0.0
        %885 = vmatpush1.xpose.msra.mxu0 0.0
        %886 = vmatprep.subr.mxu0 0.0
        %887 = vmatpush1.xpose.msra.mxu0 0.0
        %888 = vmatprep.subr.mxu0 0.0
        %889 = vmatpush1.xpose.msra.mxu0 0.0
        %890 = vmatprep.subr.mxu0 0.0
        %891 = vmatpush1.xpose.msra.mxu0 0.0
        %892 = vmatprep.subr.mxu0 0.0
        %893 = vmatpush1.xpose.msra.mxu0 0.0
        %894 = vmatprep.subr.mxu0 0.0
        %895 = vmatpush1.xpose.msra.mxu0 0.0
        %896 = vmatprep.subr.mxu0 0.0
        %897 = vmatpush1.xpose.msra.mxu0 0.0
        %898 = vmatprep.subr.mxu0 0.0
        %899 = vmatpush1.xpose.msra.mxu0 0.0
        %900 = vmatprep.subr.mxu0 0.0
        %901 = vmatpush1.xpose.msra.mxu0 0.0
        %902 = vmatprep.subr.mxu0 0.0
        %903 = vmatpush1.xpose.msra.mxu0 0.0
        %904 = vmatprep.subr.mxu0 0.0
        %905 = vmatpush1.xpose.msra.mxu0 0.0
        %906 = vmatprep.mubr.f32.mxu0 0.0
        %907 = vmatmul.mubr.f32.gmra.mrb[0].mxu0 %v749
        %v908 = vpop.f32.mrb[0].mxu0
        %v909 = vadd.f32 %v824, %v908
        %v910 = vpop.f32.mrb[0].mxu0
        %911 = vmatprep.mubr.f32.mxu0 0.0
        %912 = vmatmul.mubr.f32.gmra.mrb[0].mxu0 %v750
        %v913 = vpop.f32.mrb[0].mxu0
        %v914 = vadd.f32 %v829, %v913
        %v915 = vpop.f32.mrb[0].mxu0
        %916 = vmatprep.mubr.f32.mxu0 0.0
        %917 = vmatmul.mubr.f32.gmra.mrb[0].mxu0 %v751
        %v918 = vpop.f32.mrb[0].mxu0
        %v919 = vadd.f32 %v834, %v918
        %v920 = vpop.f32.mrb[0].mxu0
        %921 = vmatprep.mubr.f32.mxu0 0.0
        %922 = vmatmul.mubr.f32.gmra.mrb[0].mxu0 %v752
        %v923 = vpop.f32.mrb[0].mxu0
        %v924 = vadd.f32 %v839, %v923
        %v925 = vpop.f32.mrb[0].mxu0
        %926 = vdwg.mxu0
        %v927 = vld [vmem:[%s6] sm:$0xff]
        %v928 = vld [vmem:[%s6 + $0x8] sm:$0xff]
        %v929 = vld [vmem:[%s6 + $0x10] sm:$0xff]
        %v930 = vld [vmem:[%s6 + $0x18] sm:$0xff]
        %v931 = vld [vmem:[%s453] sm:$0xff]
        %vm932 = vcmask 31744
        %v934 = vsel %vm932, %v927, 0
        %v937 = vsel %vm932, %v928, 0
        %v940 = vsel %vm932, %v929, 0
        %v943 = vsel %vm932, %v930, 0
        %v946 = vsel %vm932, %v931, 0
        %948 = vmatprep.subr.mxu0 0.0
        %949 = vmatpush1.xpose.msra.mxu0 %v946
        %950 = vmatprep.subr.mxu0 0.0
        %951 = vmatpush1.xpose.msra.mxu0 0.0
        %952 = vmatprep.subr.mxu0 0.0
        %953 = vmatpush1.xpose.msra.mxu0 0.0
        %954 = vmatprep.subr.mxu0 0.0
        %955 = vmatpush1.xpose.msra.mxu0 0.0
        %956 = vmatprep.subr.mxu0 0.0
        %957 = vmatpush1.xpose.msra.mxu0 0.0
        %958 = vmatprep.subr.mxu0 0.0
        %959 = vmatpush1.xpose.msra.mxu0 0.0
        %960 = vmatprep.subr.mxu0 0.0
        %961 = vmatpush1.xpose.msra.mxu0 0.0
        %962 = vmatprep.subr.mxu0 0.0
        %963 = vmatpush1.xpose.msra.mxu0 0.0
        %964 = vmatprep.subr.mxu0 0.0
        %965 = vmatpush1.xpose.msra.mxu0 0.0
        %966 = vmatprep.subr.mxu0 0.0
        %967 = vmatpush1.xpose.msra.mxu0 0.0
        %968 = vmatprep.subr.mxu0 0.0
        %969 = vmatpush1.xpose.msra.mxu0 0.0
        %970 = vmatprep.subr.mxu0 0.0
        %971 = vmatpush1.xpose.msra.mxu0 0.0
        %972 = vmatprep.subr.mxu0 0.0
        %973 = vmatpush1.xpose.msra.mxu0 0.0
        %974 = vmatprep.subr.mxu0 0.0
        %975 = vmatpush1.xpose.msra.mxu0 0.0
        %976 = vmatprep.subr.mxu0 0.0
        %977 = vmatpush1.xpose.msra.mxu0 0.0
        %978 = vmatprep.subr.mxu0 0.0
        %979 = vmatpush1.xpose.msra.mxu0 0.0
        %980 = vmatprep.subr.mxu0 0.0
        %981 = vmatpush1.xpose.msra.mxu0 0.0
        %982 = vmatprep.subr.mxu0 0.0
        %983 = vmatpush1.xpose.msra.mxu0 0.0
        %984 = vmatprep.subr.mxu0 0.0
        %985 = vmatpush1.xpose.msra.mxu0 0.0
        %986 = vmatprep.subr.mxu0 0.0
        %987 = vmatpush1.xpose.msra.mxu0 0.0
        %988 = vmatprep.subr.mxu0 0.0
        %989 = vmatpush1.xpose.msra.mxu0 0.0
        %990 = vmatprep.subr.mxu0 0.0
        %991 = vmatpush1.xpose.msra.mxu0 0.0
        %992 = vmatprep.subr.mxu0 0.0
        %993 = vmatpush1.xpose.msra.mxu0 0.0
        %994 = vmatprep.subr.mxu0 0.0
        %995 = vmatpush1.xpose.msra.mxu0 0.0
        %996 = vmatprep.subr.mxu0 0.0
        %997 = vmatpush1.xpose.msra.mxu0 0.0
        %998 = vmatprep.subr.mxu0 0.0
        %999 = vmatpush1.xpose.msra.mxu0 0.0
        %1000 = vmatprep.subr.mxu0 0.0
        %1001 = vmatpush1.xpose.msra.mxu0 0.0
        %1002 = vmatprep.subr.mxu0 0.0
        %1003 = vmatpush1.xpose.msra.mxu0 0.0
        %1004 = vmatprep.subr.mxu0 0.0
        %1005 = vmatpush1.xpose.msra.mxu0 0.0
        %1006 = vmatprep.subr.mxu0 0.0
        %1007 = vmatpush1.xpose.msra.mxu0 0.0
        %1008 = vmatprep.subr.mxu0 0.0
        %1009 = vmatpush1.xpose.msra.mxu0 0.0
        %1010 = vmatprep.subr.mxu0 0.0
        %1011 = vmatpush1.xpose.msra.mxu0 0.0
        %1012 = vmatprep.mubr.f32.mxu0 0.0
        %1013 = vmatmul.mubr.f32.gmra.mrb[0].mxu0 %v934
        %v1014 = vpop.f32.mrb[0].mxu0
        %v1015 = vadd.f32 0.0, %v1014
        %v1016 = vpop.f32.mrb[0].mxu0
        %1017 = vmatprep.mubr.f32.mxu0 0.0
        %1018 = vmatmul.mubr.f32.gmra.mrb[0].mxu0 %v937
        %v1019 = vpop.f32.mrb[0].mxu0
        %v1020 = vadd.f32 0.0, %v1019
        %v1021 = vpop.f32.mrb[0].mxu0
        %1022 = vmatprep.mubr.f32.mxu0 0.0
        %1023 = vmatmul.mubr.f32.gmra.mrb[0].mxu0 %v940
        %v1024 = vpop.f32.mrb[0].mxu0
        %v1025 = vadd.f32 0.0, %v1024
        %v1026 = vpop.f32.mrb[0].mxu0
        %1027 = vmatprep.mubr.f32.mxu0 0.0
        %1028 = vmatmul.mubr.f32.gmra.mrb[0].mxu0 %v943
        %v1029 = vpop.f32.mrb[0].mxu0
        %v1030 = vadd.f32 0.0, %v1029
        %v1031 = vpop.f32.mrb[0].mxu0
        %1032 = vdwg.mxu0
        %v1033 = vadd.f32 %v909, %v1015
        %v1034 = vadd.f32 %v914, %v1020
        %v1035 = vadd.f32 %v919, %v1025
        %v1036 = vadd.f32 %v924, %v1030
        %v1037 = vld [vmem:[%s7] sm:$0xff]
        %v1038 = vld [vmem:[%s7 + $0x8] sm:$0xff]
        %v1039 = vld [vmem:[%s7 + $0x10] sm:$0xff]
        %v1040 = vld [vmem:[%s7 + $0x18] sm:$0xff]
        %1042 = vset.pattern.permute.xlu0 0
        %1043 = vperm.xlu0 %1042, %v1037
        %v1044 = vpop.permute.xlu0 %1043
        %1047 = vset.pattern.permute.xlu0 0
        %1048 = vperm.xlu0 %1047, %v1038
        %v1049 = vpop.permute.xlu0 %1048
        %1052 = vset.pattern.permute.xlu0 0
        %1053 = vperm.xlu0 %1052, %v1039
        %v1054 = vpop.permute.xlu0 %1053
        %1057 = vset.pattern.permute.xlu0 0
        %1058 = vperm.xlu0 %1057, %v1040
        %v1059 = vpop.permute.xlu0 %1058
        %v1061 = vadd.f32 %v1033, %v1044
        %v1062 = vadd.f32 %v1034, %v1049
        %v1063 = vadd.f32 %v1035, %v1054
        %v1064 = vadd.f32 %v1036, %v1059
        %v1065 = vmax.f32 %v1061, 0.0
        %v1066 = vmax.f32 %v1062, 0.0
        %v1067 = vmax.f32 %v1063, 0.0
        %v1068 = vmax.f32 %v1064, 0.0
        %v1069 = vld [vmem:[%s8] sm:$0xff]
        %v1070 = vld [vmem:[%s8 + $0x8] sm:$0xff]
        %v1071 = vld [vmem:[%s8 + $0x10] sm:$0xff]
        %v1072 = vld [vmem:[%s8 + $0x18] sm:$0xff]
        %v1073 = vld [vmem:[%s9] sm:$0xff]
        %v1074 = vld [vmem:[%s9 + $0x8] sm:$0xff]
        %v1075 = vld [vmem:[%s9 + $0x10] sm:$0xff]
        %v1076 = vld [vmem:[%s9 + $0x18] sm:$0xff]
        %1078 = vset.pattern.permute.xlu0 0
        %1079 = vperm.xlu0 %1078, %v1073
        %v1080 = vpop.permute.xlu0 %1079
        %1083 = vset.pattern.permute.xlu0 0
        %1084 = vperm.xlu0 %1083, %v1074
        %v1085 = vpop.permute.xlu0 %1084
        %1088 = vset.pattern.permute.xlu0 0
        %1089 = vperm.xlu0 %1088, %v1075
        %v1090 = vpop.permute.xlu0 %1089
        %1093 = vset.pattern.permute.xlu0 0
        %1094 = vperm.xlu0 %1093, %v1076
        %v1095 = vpop.permute.xlu0 %1094
        %v1098 = vsel %vm606, %v1069, 0
        %v1101 = vsel %vm606, %v1070, 0
        %v1104 = vsel %vm606, %v1071, 0
        %v1107 = vsel %vm606, %v1072, 0
        %1109 = vmatprep.subr.mxu0 0.0
        %1110 = vmatpush1.msra.mxu0 %v1065
        %1111 = vmatprep.subr.mxu0 0.0
        %1112 = vmatpush1.msra.mxu0 %v1066
        %1113 = vmatprep.subr.mxu0 0.0
        %1114 = vmatpush1.msra.mxu0 %v1067
        %1115 = vmatprep.subr.mxu0 0.0
        %1116 = vmatpush1.msra.mxu0 %v1068
        %1117 = vmatprep.subr.mxu0 0.0
        %1118 = vmatpush1.msra.mxu0 0.0
        %1119 = vmatprep.subr.mxu0 0.0
        %1120 = vmatpush1.msra.mxu0 0.0
        %1121 = vmatprep.subr.mxu0 0.0
        %1122 = vmatpush1.msra.mxu0 0.0
        %1123 = vmatprep.subr.mxu0 0.0
        %1124 = vmatpush1.msra.mxu0 0.0
        %1125 = vmatprep.subr.mxu0 0.0
        %1126 = vmatpush1.msra.mxu0 0.0
        %1127 = vmatprep.subr.mxu0 0.0
        %1128 = vmatpush1.msra.mxu0 0.0
        %1129 = vmatprep.subr.mxu0 0.0
        %1130 = vmatpush1.msra.mxu0 0.0
        %1131 = vmatprep.subr.mxu0 0.0
        %1132 = vmatpush1.msra.mxu0 0.0
        %1133 = vmatprep.subr.mxu0 0.0
        %1134 = vmatpush1.msra.mxu0 0.0
        %1135 = vmatprep.subr.mxu0 0.0
        %1136 = vmatpush1.msra.mxu0 0.0
        %1137 = vmatprep.subr.mxu0 0.0
        %1138 = vmatpush1.msra.mxu0 0.0
        %1139 = vmatprep.subr.mxu0 0.0
        %1140 = vmatpush1.msra.mxu0 0.0
        %1141 = vmatprep.subr.mxu0 0.0
        %1142 = vmatpush1.msra.mxu0 0.0
        %1143 = vmatprep.subr.mxu0 0.0
        %1144 = vmatpush1.msra.mxu0 0.0
        %1145 = vmatprep.subr.mxu0 0.0
        %1146 = vmatpush1.msra.mxu0 0.0
        %1147 = vmatprep.subr.mxu0 0.0
        %1148 = vmatpush1.msra.mxu0 0.0
        %1149 = vmatprep.subr.mxu0 0.0
        %1150 = vmatpush1.msra.mxu0 0.0
        %1151 = vmatprep.subr.mxu0 0.0
        %1152 = vmatpush1.msra.mxu0 0.0
        %1153 = vmatprep.subr.mxu0 0.0
        %1154 = vmatpush1.msra.mxu0 0.0
        %1155 = vmatprep.subr.mxu0 0.0
        %1156 = vmatpush1.msra.mxu0 0.0
        %1157 = vmatprep.subr.mxu0 0.0
        %1158 = vmatpush1.msra.mxu0 0.0
        %1159 = vmatprep.subr.mxu0 0.0
        %1160 = vmatpush1.msra.mxu0 0.0
        %1161 = vmatprep.subr.mxu0 0.0
        %1162 = vmatpush1.msra.mxu0 0.0
        %1163 = vmatprep.subr.mxu0 0.0
        %1164 = vmatpush1.msra.mxu0 0.0
        %1165 = vmatprep.subr.mxu0 0.0
        %1166 = vmatpush1.msra.mxu0 0.0
        %1167 = vmatprep.subr.mxu0 0.0
        %1168 = vmatpush1.msra.mxu0 0.0
        %1169 = vmatprep.subr.mxu0 0.0
        %1170 = vmatpush1.msra.mxu0 0.0
        %1171 = vmatprep.subr.mxu0 0.0
        %1172 = vmatpush1.msra.mxu0 0.0
        %1173 = vmatprep.mubr.f32.mxu0 0.0
        %1174 = vmatmul.mubr.f32.gmra.mrb[0].mxu0 %v1098
        %v1175 = vpop.f32.mrb[0].mxu0
        %v1176 = vadd.f32 %v1080, %v1175
        %v1177 = vpop.f32.mrb[0].mxu0
        %1178 = vmatprep.mubr.f32.mxu0 0.0
        %1179 = vmatmul.mubr.f32.gmra.mrb[0].mxu0 %v1101
        %v1180 = vpop.f32.mrb[0].mxu0
        %v1181 = vadd.f32 %v1085, %v1180
        %v1182 = vpop.f32.mrb[0].mxu0
        %1183 = vmatprep.mubr.f32.mxu0 0.0
        %1184 = vmatmul.mubr.f32.gmra.mrb[0].mxu0 %v1104
        %v1185 = vpop.f32.mrb[0].mxu0
        %v1186 = vadd.f32 %v1090, %v1185
        %v1187 = vpop.f32.mrb[0].mxu0
        %1188 = vmatprep.mubr.f32.mxu0 0.0
        %1189 = vmatmul.mubr.f32.gmra.mrb[0].mxu0 %v1107
        %v1190 = vpop.f32.mrb[0].mxu0
        %v1191 = vadd.f32 %v1095, %v1190
        %v1192 = vpop.f32.mrb[0].mxu0
        %1193 = vdwg.mxu0
        %v1194 = vmax.f32 %v1176, 0.0
        %v1195 = vmax.f32 %v1181, 0.0
        %v1196 = vmax.f32 %v1186, 0.0
        %v1197 = vmax.f32 %v1191, 0.0
        %v1198 = vld [vmem:[%s10] sm:$0x1]
        %v1199 = vld [vmem:[#allocation2] sm:$0x1]
        %1201 = vset.pattern.permute.xlu0 0
        %1202 = vperm.xlu0 %1201, %v1199
        %v1203 = vpop.permute.xlu0 %1202
        %v1205 = vlaneseq
        %v1206 = vshrl.u32 %v1205, 7
        %v1207 = vsub.s32 0, %v1206
        %v1208 = vrot.slane %v1203, %v1207
        %v1210 = vsel %vm606, %v1198, 0
        %1212 = vmatprep.subr.mxu0 0.0
        %1213 = vmatpush1.msra.mxu0 %v1194
        %1214 = vmatprep.subr.mxu0 0.0
        %1215 = vmatpush1.msra.mxu0 %v1195
        %1216 = vmatprep.subr.mxu0 0.0
        %1217 = vmatpush1.msra.mxu0 %v1196
        %1218 = vmatprep.subr.mxu0 0.0
        %1219 = vmatpush1.msra.mxu0 %v1197
        %1220 = vmatprep.subr.mxu0 0.0
        %1221 = vmatpush1.msra.mxu0 0.0
        %1222 = vmatprep.subr.mxu0 0.0
        %1223 = vmatpush1.msra.mxu0 0.0
        %1224 = vmatprep.subr.mxu0 0.0
        %1225 = vmatpush1.msra.mxu0 0.0
        %1226 = vmatprep.subr.mxu0 0.0
        %1227 = vmatpush1.msra.mxu0 0.0
        %1228 = vmatprep.subr.mxu0 0.0
        %1229 = vmatpush1.msra.mxu0 0.0
        %1230 = vmatprep.subr.mxu0 0.0
        %1231 = vmatpush1.msra.mxu0 0.0
        %1232 = vmatprep.subr.mxu0 0.0
        %1233 = vmatpush1.msra.mxu0 0.0
        %1234 = vmatprep.subr.mxu0 0.0
        %1235 = vmatpush1.msra.mxu0 0.0
        %1236 = vmatprep.subr.mxu0 0.0
        %1237 = vmatpush1.msra.mxu0 0.0
        %1238 = vmatprep.subr.mxu0 0.0
        %1239 = vmatpush1.msra.mxu0 0.0
        %1240 = vmatprep.subr.mxu0 0.0
        %1241 = vmatpush1.msra.mxu0 0.0
        %1242 = vmatprep.subr.mxu0 0.0
        %1243 = vmatpush1.msra.mxu0 0.0
        %1244 = vmatprep.subr.mxu0 0.0
        %1245 = vmatpush1.msra.mxu0 0.0
        %1246 = vmatprep.subr.mxu0 0.0
        %1247 = vmatpush1.msra.mxu0 0.0
        %1248 = vmatprep.subr.mxu0 0.0
        %1249 = vmatpush1.msra.mxu0 0.0
        %1250 = vmatprep.subr.mxu0 0.0
        %1251 = vmatpush1.msra.mxu0 0.0
        %1252 = vmatprep.subr.mxu0 0.0
        %1253 = vmatpush1.msra.mxu0 0.0
        %1254 = vmatprep.subr.mxu0 0.0
        %1255 = vmatpush1.msra.mxu0 0.0
        %1256 = vmatprep.subr.mxu0 0.0
        %1257 = vmatpush1.msra.mxu0 0.0
        %1258 = vmatprep.subr.mxu0 0.0
        %1259 = vmatpush1.msra.mxu0 0.0
        %1260 = vmatprep.subr.mxu0 0.0
        %1261 = vmatpush1.msra.mxu0 0.0
        %1262 = vmatprep.subr.mxu0 0.0
        %1263 = vmatpush1.msra.mxu0 0.0
        %1264 = vmatprep.subr.mxu0 0.0
        %1265 = vmatpush1.msra.mxu0 0.0
        %1266 = vmatprep.subr.mxu0 0.0
        %1267 = vmatpush1.msra.mxu0 0.0
        %1268 = vmatprep.subr.mxu0 0.0
        %1269 = vmatpush1.msra.mxu0 0.0
        %1270 = vmatprep.subr.mxu0 0.0
        %1271 = vmatpush1.msra.mxu0 0.0
        %1272 = vmatprep.subr.mxu0 0.0
        %1273 = vmatpush1.msra.mxu0 0.0
        %1274 = vmatprep.subr.mxu0 0.0
        %1275 = vmatpush1.msra.mxu0 0.0
        %1276 = vmatprep.mubr.f32.mxu0 0.0
        %1277 = vmatmul.mubr.f32.gmra.mrb[0].mxu0 %v1210
        %v1278 = vpop.f32.mrb[0].mxu0
        %v1279 = vadd.f32 %v1208, %v1278
        %v1280 = vpop.f32.mrb[0].mxu0
        %1281 = vdwg.mxu0
        %vm1282 = vcmask 57344
        %1283 = vst.msk [vmem:[%s437] sm:$0x1] %vm1282, %v1279
        %s1284 = sand.u32 %s303, 1
        %s1285 = scalar_lea.sflag [#allocation4], %s1284
        %s1286 = sand.u32 %s303, 1
        %s1287 = scalar_lea.vmem [#allocation3], %s1286
        // Predicated region
        $region69: #{node_pair_removal_decoder.1} parent=67 // pred_check
          %p1288 = pneg %p313
        $region70: #{node_pair_removal_decoder.1} parent=67 // pred_check_branch
          %1290 = sbr.rel (%p1288) target = $region72
        $region71: #{node_pair_removal_decoder.1} parent=67 // pred_region
          %s1292 = ssub.s32 16, 16
          %1293 = vsyncadd %s1285, %s1292
          %s1294 = smul.addr %s28, 16
          %s1295 = scalar_lea.hbm %s12, %s1294
          %s1297 = sshll.u32 %s1287, 4
          %s1298 = int_to_ptr.vmem [resolvable:$true] %s1297
          %1300 = dma.vmem_to_hbm [thread:$0]  %s1298, 16, %s1295, %s1285
        $region72: #{node_pair_removal_decoder.1} parent=67 // pred_fallthru
          _
      $region68: #{node_pair_removal_decoder.1} parent=5 // pred_fallthru
        _
      %p1301 = scmp.le.s32.totalorder 2, %s23
      // Predicated region
      $region73: #{node_pair_removal_decoder.1} parent=5 // pred_check
        %p1302 = pneg %p1301
      $region74: #{node_pair_removal_decoder.1} parent=5 // pred_check_branch
        %1304 = sbr.rel (%p1302) target = $region76
      $region75: #{node_pair_removal_decoder.1} parent=5 // pred_region
        %s1305 = ssub.s32 %s23, 2
        // Predicated region
        $region77: #{node_pair_removal_decoder.1} parent=75 // pred_check
          %p1306 = pneg %p319
        $region78: #{node_pair_removal_decoder.1} parent=75 // pred_check_branch
          %1308 = sbr.rel (%p1306) target = $region80
        $region79: #{node_pair_removal_decoder.1} parent=75 // pred_region
          %s1309 = sand.u32 %s304, 1
          %s1310 = scalar_lea.sflag [#allocation4], %s1309
          %s1311 = sand.u32 %s304, 1
          %s1312 = scalar_lea.vmem [#allocation3], %s1311
          %1313 = dma.done %s1310, 16
        $region80: #{node_pair_removal_decoder.1} parent=75 // pred_fallthru
          _
      $region76: #{node_pair_removal_decoder.1} parent=5 // pred_fallthru
        _
    $region6: #{node_pair_removal_decoder.1} parent=1 // loop_footer
      %s27 = sadd.s32 1, %s23
    $region7: #{node_pair_removal_decoder.1} parent=1 // loop_footer_branch
      %22 = sbr.rel target = $region3
    $region8: #{node_pair_removal_decoder.1} parent=1 // loop_exit
      _
    %1314 = vsyncpa [#allocation4], 1
    %s1315 = scalar_lea.sflag [#allocation4], 1
    %1316 = vsyncpa %s1315, 1

</llo_original>
